<compile_context>
chip_gen: v7x
topology: tpu7x:2x2x1
jax: 0.10.0
libtpu: 0.0.40
codegen_flags: <defaults>
</compile_context>

<pallas_src>
import functools
import math

import jax
import jax.numpy as jnp
from jax.experimental import pallas as pl
from jax.experimental.pallas import tpu as pltpu


# ----------------------------- fused kernel ----------------------------------

def _decoder_kernel(tgt_ref, mem_ref,
                    wqkv_s_ref, bqkv_s_ref, wo_s_ref, bo_s_ref,
                    wqkv_c_ref, bqkv_c_ref, wo_c_ref, bo_c_ref,
                    ln_g_ref, ln_b_ref,
                    w1_ref, b1_ref, w2_ref, b2_ref,
                    out_ref, *, num_heads, eps):
    f32 = jnp.float32
    bf16 = jnp.bfloat16

    tgt = tgt_ref[0]                       # (T, E) f32
    mem = mem_ref[0]                       # (S, E) f32
    t, e = tgt.shape
    d = e // num_heads
    scale = 1.0 / math.sqrt(d)

    tgt_bf = tgt.astype(bf16)
    mem_bf = mem.astype(bf16)

    def layer_norm(x):                     # f32 in / f32 out, shared gamma/beta
        mu = jnp.mean(x, axis=-1, keepdims=True)
        var = jnp.mean(jnp.square(x - mu), axis=-1, keepdims=True)
        return (x - mu) * jax.lax.rsqrt(var + eps) * ln_g_ref[...] + ln_b_ref[...]

    def mm(a_bf, w_bf, bias_f32):          # bf16 matmul, f32 accumulate + bias
        return jnp.dot(a_bf, w_bf, preferred_element_type=f32) + bias_f32

    def attention(q, k, v, mask):
        """q: (T, E) f32, k/v: (S, E) f32 -> (T, E) f32 (heads unrolled in VMEM)."""
        outs = []
        for h in range(num_heads):
            sl = slice(h * d, (h + 1) * d)
            qh = q[:, sl].astype(bf16)
            kh = k[:, sl].astype(bf16)
            vh = v[:, sl].astype(bf16)
            # q @ k^T without materializing a transpose (contract on last dims)
            s = jax.lax.dot_general(qh, kh, (((1,), (1,)), ((), ())),
                                    preferred_element_type=f32) * scale
            if mask is not None:
                s = s + mask
            m = jnp.max(s, axis=-1, keepdims=True)
            p = jnp.exp(s - m)
            denom = jnp.sum(p, axis=-1, keepdims=True)
            p = p * pl.reciprocal(denom, approx=True)
            outs.append(jnp.dot(p.astype(bf16), vh, preferred_element_type=f32))
        return jnp.concatenate(outs, axis=-1)      # lane-dense (T, E)

    # ---- self-attention block (causal mask generated in-kernel) ----
    qkv = mm(tgt_bf, wqkv_s_ref[...], bqkv_s_ref[...])           # (T, 3E)
    rows = jax.lax.broadcasted_iota(jnp.int32, (t, t), 0)
    cols = jax.lax.broadcasted_iota(jnp.int32, (t, t), 1)
    causal = jnp.where(cols <= rows, 0.0, -jnp.inf).astype(f32)
    a = attention(qkv[:, :e], qkv[:, e:2 * e], qkv[:, 2 * e:], causal)
    a = mm(a.astype(bf16), wo_s_ref[...], bo_s_ref[...])
    x1 = layer_norm(a + tgt)

    # ---- encoder-decoder attention (query is the ORIGINAL tgt, per source) ----
    w_c = wqkv_c_ref[...]                                        # (E, 3E) bf16
    q_c = mm(tgt_bf, w_c[:, :e], bqkv_c_ref[:, :e])              # (T, E)
    kv_c = mm(mem_bf, w_c[:, e:], bqkv_c_ref[:, e:])             # (S, 2E)
    a = attention(q_c, kv_c[:, :e], kv_c[:, e:], None)
    a = mm(a.astype(bf16), wo_c_ref[...], bo_c_ref[...])
    x2 = layer_norm(a + x1)

    # ---- FFN (Linear -> Dropout(p=0) -> ReLU -> Linear) + add & LN ----
    h = jnp.maximum(mm(x2.astype(bf16), w1_ref[...], b1_ref[...]), 0.0)
    h = mm(h.astype(bf16), w2_ref[...], b2_ref[...])
    out_ref[0] = layer_norm(h + x2)


# ----------------------------- wrapper ----------------------------------------

def decoder_forward(params, memory, tgt, *, num_heads, eps=1e-5):
    b, t, e = tgt.shape
    s = memory.shape[1]
    ff = params["ffn_w1"].shape[0]
    bf16 = jnp.bfloat16

    # Pre-transpose to (In, Out) layout and cast matmul weights to bf16 once,
    # outside the kernel (no in-kernel .T, half the weight DMA traffic).
    wqkv_s = params["self_attn"]["in_w"].T.astype(bf16)    # (E, 3E)
    wo_s = params["self_attn"]["out_w"].T.astype(bf16)     # (E, E)
    wqkv_c = params["cross_attn"]["in_w"].T.astype(bf16)   # (E, 3E)
    wo_c = params["cross_attn"]["out_w"].T.astype(bf16)    # (E, E)
    w1 = params["ffn_w1"].T.astype(bf16)                   # (E, FF)
    w2 = params["ffn_w2"].T.astype(bf16)                   # (FF, E)

    r2 = lambda v: v.reshape(1, -1).astype(jnp.float32)    # biases stay f32
    bqkv_s, bo_s = r2(params["self_attn"]["in_b"]), r2(params["self_attn"]["out_b"])
    bqkv_c, bo_c = r2(params["cross_attn"]["in_b"]), r2(params["cross_attn"]["out_b"])
    ln_g, ln_b = r2(params["ln_g"]), r2(params["ln_b"])
    b1, b2 = r2(params["ffn_b1"]), r2(params["ffn_b2"])

    def rep(shape):   # whole-array block, same block index across the batch grid
        return pl.BlockSpec(shape, lambda i: (0,) * len(shape))

    kernel = functools.partial(_decoder_kernel, num_heads=num_heads, eps=eps)
    return pl.pallas_call(
        kernel,
        out_shape=jax.ShapeDtypeStruct((b, t, e), jnp.float32),
        grid=(b,),
        in_specs=[
            pl.BlockSpec((1, t, e), lambda i: (i, 0, 0)),   # tgt
            pl.BlockSpec((1, s, e), lambda i: (i, 0, 0)),   # memory
            rep((e, 3 * e)), rep((1, 3 * e)), rep((e, e)), rep((1, e)),   # self-attn
            rep((e, 3 * e)), rep((1, 3 * e)), rep((e, e)), rep((1, e)),   # cross-attn
            rep((1, e)), rep((1, e)),                                      # layernorm
            rep((e, ff)), rep((1, ff)), rep((ff, e)), rep((1, e)),         # FFN
        ],
        out_specs=pl.BlockSpec((1, t, e), lambda i: (i, 0, 0)),
        compiler_params=pltpu.CompilerParams(
            dimension_semantics=("parallel",)),   # 2 TCs on v7x each take a batch
    )(tgt, memory,
      wqkv_s, bqkv_s, wo_s, bo_s,
      wqkv_c, bqkv_c, wo_c, bo_c,
      ln_g, ln_b, w1, b1, w2, b2)


# ----------------------------- pure-JAX reference ------------------------------

def _mha_ref(query, key, value, p, num_heads, attn_mask=None):
    b, t, e = query.shape
    s = key.shape[1]
    d = e // num_heads
    w_q, w_k, w_v = p["in_w"][:e], p["in_w"][e:2 * e], p["in_w"][2 * e:]
    b_q, b_k, b_v = p["in_b"][:e], p["in_b"][e:2 * e], p["in_b"][2 * e:]
    q = (query @ w_q.T + b_q).reshape(b, t, num_heads, d).transpose(0, 2, 1, 3)
    k = (key @ w_k.T + b_k).reshape(b, s, num_heads, d).transpose(0, 2, 1, 3)
    v = (value @ w_v.T + b_v).reshape(b, s, num_heads, d).transpose(0, 2, 1, 3)
    logits = jnp.einsum("bhtd,bhsd->bhts", q, k) / math.sqrt(d)
    if attn_mask is not None:
        logits = logits + attn_mask
    w = jax.nn.softmax(logits, axis=-1)
    o = jnp.einsum("bhts,bhsd->bhtd", w, v).transpose(0, 2, 1, 3).reshape(b, t, e)
    return o @ p["out_w"].T + p["out_b"]


def decoder_reference(params, memory, tgt, *, num_heads, eps=1e-5):
    t = tgt.shape[1]
    ln = lambda x: ((x - x.mean(-1, keepdims=True))
                    * jax.lax.rsqrt(x.var(-1, keepdims=True) + eps)
                    * params["ln_g"] + params["ln_b"])
    causal = jnp.where(jnp.arange(t)[None, :] <= jnp.arange(t)[:, None],
                       0.0, -jnp.inf).astype(jnp.float32)
    x = ln(_mha_ref(tgt, tgt, tgt, params["self_attn"], num_heads, causal) + tgt)
    x = ln(_mha_ref(tgt, memory, memory, params["cross_attn"], num_heads, None) + x)
    h = jnp.maximum(x @ params["ffn_w1"].T + params["ffn_b1"], 0.0)
    h = h @ params["ffn_w2"].T + params["ffn_b2"]
    return ln(h + x)


# ----------------------------- params ------------------------------------------

def init_params(key, embed_dim, dim_feedforward):
    e, ff = embed_dim, dim_feedforward
    ks = jax.random.split(key, 12)

    def rn(k, shape, scale=0.1):
        return jax.random.normal(k, shape, jnp.float32) * scale

    return {
        "self_attn": {
            "in_w": rn(ks[0], (3 * e, e)), "in_b": rn(ks[1], (3 * e,)),
            "out_w": rn(ks[2], (e, e)), "out_b": rn(ks[3], (e,)),
        },
        "cross_attn": {
            "in_w": rn(ks[4], (3 * e, e)), "in_b": rn(ks[5], (3 * e,)),
            "out_w": rn(ks[6], (e, e)), "out_b": rn(ks[7], (e,)),
        },
        # nn.LayerNorm default init (shared across all three uses)
        "ln_g": jnp.ones((e,), jnp.float32),
        "ln_b": jnp.zeros((e,), jnp.float32),
        "ffn_w1": rn(ks[8], (ff, e)), "ffn_b1": rn(ks[9], (ff,)),
        "ffn_w2": rn(ks[10], (e, ff)), "ffn_b2": rn(ks[11], (e,)),
    }


# ----------------------------- main ---------------------------------------------

if __name__ == "__main__":
    EMBED_DIM, NUM_HEADS, FFN_DIM = 32, 4, 64
    B, T_TGT, S_MEM = 2, 8, 12

    root = jax.random.PRNGKey(0)
    k_params, k_tgt, k_mem = jax.random.split(root, 3)

    params = init_params(k_params, EMBED_DIM, FFN_DIM)
    tgt = jax.random.normal(k_tgt, (B, T_TGT, EMBED_DIM), jnp.float32)
    memory = jax.random.normal(k_mem, (B, S_MEM, EMBED_DIM), jnp.float32)

    fwd = jax.jit(functools.partial(decoder_forward, num_heads=NUM_HEADS))
    y = fwd(params, memory, tgt)
    y = jax.block_until_ready(y)

    assert y.shape == (B, T_TGT, EMBED_DIM), y.shape
    assert bool(jnp.all(jnp.isfinite(y)))

    # Sanity check against a pure-JAX f32 reference of the PyTorch forward
    # (loose tolerance because the kernel runs bf16 matmuls / approx recip).
    y_ref = decoder_reference(params, memory, tgt, num_heads=NUM_HEADS)
    err = float(jnp.max(jnp.abs(y - y_ref)))
    assert err < 5e-2, f"max abs error vs reference: {err}"

    print("KERNEL_OK")
</pallas_src>

<mosaic_0001>
module attributes {stable_mosaic.version = 11 : i64} {
  func.func @_decoder_kernel(%arg0: i32, %arg1: memref<1x8x32xf32, #tpu.memory_space<vmem>>, %arg2: memref<1x12x32xf32, #tpu.memory_space<vmem>>, %arg3: memref<32x96xbf16, #tpu.memory_space<vmem>>, %arg4: memref<1x96xf32, #tpu.memory_space<vmem>>, %arg5: memref<32x32xbf16, #tpu.memory_space<vmem>>, %arg6: memref<1x32xf32, #tpu.memory_space<vmem>>, %arg7: memref<32x96xbf16, #tpu.memory_space<vmem>>, %arg8: memref<1x96xf32, #tpu.memory_space<vmem>>, %arg9: memref<32x32xbf16, #tpu.memory_space<vmem>>, %arg10: memref<1x32xf32, #tpu.memory_space<vmem>>, %arg11: memref<1x32xf32, #tpu.memory_space<vmem>>, %arg12: memref<1x32xf32, #tpu.memory_space<vmem>>, %arg13: memref<32x64xbf16, #tpu.memory_space<vmem>>, %arg14: memref<1x64xf32, #tpu.memory_space<vmem>>, %arg15: memref<64x32xbf16, #tpu.memory_space<vmem>>, %arg16: memref<1x32xf32, #tpu.memory_space<vmem>>, %arg17: memref<1x8x32xf32, #tpu.memory_space<vmem>>) attributes {dimension_semantics = [#tpu.dimension_semantics<parallel>], iteration_bounds = array<i64: 2>, scalar_prefetch = 0 : i64, scratch_operands = 0 : i64, tpu.core_type = #tpu.core_type<tc>, window_params = [{transform_indices = @transform_0, window_bounds = array<i64: 1, 8, 32>}, {transform_indices = @transform_1, window_bounds = array<i64: 1, 12, 32>}, {pipeline_mode = #tpu.pipeline_mode<synchronous>, transform_indices = @transform_2, window_bounds = array<i64: 32, 96>}, {pipeline_mode = #tpu.pipeline_mode<synchronous>, transform_indices = @transform_3, window_bounds = array<i64: 1, 96>}, {pipeline_mode = #tpu.pipeline_mode<synchronous>, transform_indices = @transform_4, window_bounds = array<i64: 32, 32>}, {pipeline_mode = #tpu.pipeline_mode<synchronous>, transform_indices = @transform_5, window_bounds = array<i64: 1, 32>}, {pipeline_mode = #tpu.pipeline_mode<synchronous>, transform_indices = @transform_6, window_bounds = array<i64: 32, 96>}, {pipeline_mode = #tpu.pipeline_mode<synchronous>, transform_indices = @transform_7, window_bounds = array<i64: 1, 96>}, {pipeline_mode = #tpu.pipeline_mode<synchronous>, transform_indices = @transform_8, window_bounds = array<i64: 32, 32>}, {pipeline_mode = #tpu.pipeline_mode<synchronous>, transform_indices = @transform_9, window_bounds = array<i64: 1, 32>}, {pipeline_mode = #tpu.pipeline_mode<synchronous>, transform_indices = @transform_10, window_bounds = array<i64: 1, 32>}, {pipeline_mode = #tpu.pipeline_mode<synchronous>, transform_indices = @transform_11, window_bounds = array<i64: 1, 32>}, {pipeline_mode = #tpu.pipeline_mode<synchronous>, transform_indices = @transform_12, window_bounds = array<i64: 32, 64>}, {pipeline_mode = #tpu.pipeline_mode<synchronous>, transform_indices = @transform_13, window_bounds = array<i64: 1, 64>}, {pipeline_mode = #tpu.pipeline_mode<synchronous>, transform_indices = @transform_14, window_bounds = array<i64: 64, 32>}, {pipeline_mode = #tpu.pipeline_mode<synchronous>, transform_indices = @transform_15, window_bounds = array<i64: 1, 32>}, {transform_indices = @transform_16, window_bounds = array<i64: 1, 8, 32>}]} {
    %c0 = arith.constant 0 : index
    %c0_0 = arith.constant 0 : index
    %c0_1 = arith.constant 0 : index
    %0 = vector.load %arg1[%c0, %c0_0, %c0_1] : memref<1x8x32xf32, #tpu.memory_space<vmem>>, vector<1x8x32xf32>
    %1 = vector.shape_cast %0 : vector<1x8x32xf32> to vector<8x32xf32>
    %c0_2 = arith.constant 0 : index
    %c0_3 = arith.constant 0 : index
    %c0_4 = arith.constant 0 : index
    %2 = vector.load %arg2[%c0_2, %c0_3, %c0_4] : memref<1x12x32xf32, #tpu.memory_space<vmem>>, vector<1x12x32xf32>
    %3 = vector.shape_cast %2 : vector<1x12x32xf32> to vector<12x32xf32>
    %4 = arith.truncf %1 : vector<8x32xf32> to vector<8x32xbf16>
    %5 = arith.truncf %3 : vector<12x32xf32> to vector<12x32xbf16>
    %c0_5 = arith.constant 0 : index
    %c0_6 = arith.constant 0 : index
    %6 = vector.load %arg3[%c0_5, %c0_6] : memref<32x96xbf16, #tpu.memory_space<vmem>>, vector<32x96xbf16>
    %c0_7 = arith.constant 0 : index
    %c0_8 = arith.constant 0 : index
    %7 = vector.load %arg4[%c0_7, %c0_8] : memref<1x96xf32, #tpu.memory_space<vmem>>, vector<1x96xf32>
    %cst = arith.constant dense<0.000000e+00> : vector<8x96xf32>
    %8 = tpu.matmul %4, %6, %cst {dimension_numbers = #tpu.dot_dimension_numbers<[1], [0], [0], [1], [0, 0, 1, 1], [], []>} : vector<8x32xbf16>, vector<32x96xbf16>, vector<8x96xf32> -> vector<8x96xf32>
    %9 = vector.broadcast %7 : vector<1x96xf32> to vector<8x96xf32>
    %10 = arith.addf %8, %9 : vector<8x96xf32>
    %11 = tpu.iota {dimensions = array<i32: 0>} : vector<8x8xi32>
    %12 = tpu.iota {dimensions = array<i32: 1>} : vector<8x8xi32>
    %13 = arith.cmpi sle, %12, %11 : vector<8x8xi32>
    %cst_9 = arith.constant 0.000000e+00 : f32
    %cst_10 = arith.constant 0xFF800000 : f32
    %14 = vector.broadcast %cst_9 : f32 to vector<8x8xf32>
    %15 = vector.broadcast %cst_10 : f32 to vector<8x8xf32>
    %16 = arith.select %13, %14, %15 : vector<8x8xi1>, vector<8x8xf32>
    %17 = vector.extract_strided_slice %10 {offsets = [0, 0], sizes = [8, 32], strides = [1, 1]} : vector<8x96xf32> to vector<8x32xf32>
    %18 = vector.extract_strided_slice %10 {offsets = [0, 32], sizes = [8, 32], strides = [1, 1]} : vector<8x96xf32> to vector<8x32xf32>
    %19 = vector.extract_strided_slice %10 {offsets = [0, 64], sizes = [8, 32], strides = [1, 1]} : vector<8x96xf32> to vector<8x32xf32>
    %20 = vector.extract_strided_slice %17 {offsets = [0, 0], sizes = [8, 8], strides = [1, 1]} : vector<8x32xf32> to vector<8x8xf32>
    %21 = arith.truncf %20 : vector<8x8xf32> to vector<8x8xbf16>
    %22 = vector.extract_strided_slice %18 {offsets = [0, 0], sizes = [8, 8], strides = [1, 1]} : vector<8x32xf32> to vector<8x8xf32>
    %23 = arith.truncf %22 : vector<8x8xf32> to vector<8x8xbf16>
    %24 = vector.extract_strided_slice %19 {offsets = [0, 0], sizes = [8, 8], strides = [1, 1]} : vector<8x32xf32> to vector<8x8xf32>
    %25 = arith.truncf %24 : vector<8x8xf32> to vector<8x8xbf16>
    %cst_11 = arith.constant dense<0.000000e+00> : vector<8x8xf32>
    %26 = tpu.matmul %21, %23, %cst_11 {dimension_numbers = #tpu.dot_dimension_numbers<[1], [1], [0], [0], [0, 0, 1, 0], [], []>} : vector<8x8xbf16>, vector<8x8xbf16>, vector<8x8xf32> -> vector<8x8xf32>
    %cst_12 = arith.constant 0.353553385 : f32
    %27 = vector.broadcast %cst_12 : f32 to vector<8x8xf32>
    %28 = arith.mulf %26, %27 : vector<8x8xf32>
    %29 = arith.addf %28, %16 : vector<8x8xf32>
    %cst_13 = arith.constant dense<0xFF800000> : vector<8xf32>
    %30 = vector.multi_reduction <maximumf>, %29, %cst_13 [1] : vector<8x8xf32> to vector<8xf32>
    %31 = vector.shape_cast %30 : vector<8xf32> to vector<8x1xf32>
    %32 = vector.broadcast %31 : vector<8x1xf32> to vector<8x8xf32>
    %33 = arith.subf %29, %32 : vector<8x8xf32>
    %34 = math.exp %33 : vector<8x8xf32>
    %cst_14 = arith.constant dense<0.000000e+00> : vector<8xf32>
    %35 = vector.multi_reduction <add>, %34, %cst_14 [1] : vector<8x8xf32> to vector<8xf32>
    %36 = vector.shape_cast %35 : vector<8xf32> to vector<8x1xf32>
    %37 = tpu.reciprocal %36 {approx = true} : vector<8x1xf32> -> vector<8x1xf32>
    %38 = vector.broadcast %37 : vector<8x1xf32> to vector<8x8xf32>
    %39 = arith.mulf %34, %38 : vector<8x8xf32>
    %40 = arith.truncf %39 : vector<8x8xf32> to vector<8x8xbf16>
    %cst_15 = arith.constant dense<0.000000e+00> : vector<8x8xf32>
    %41 = tpu.matmul %40, %25, %cst_15 {dimension_numbers = #tpu.dot_dimension_numbers<[1], [0], [0], [1], [0, 0, 1, 1], [], []>} : vector<8x8xbf16>, vector<8x8xbf16>, vector<8x8xf32> -> vector<8x8xf32>
    %42 = vector.extract_strided_slice %17 {offsets = [0, 8], sizes = [8, 8], strides = [1, 1]} : vector<8x32xf32> to vector<8x8xf32>
    %43 = arith.truncf %42 : vector<8x8xf32> to vector<8x8xbf16>
    %44 = vector.extract_strided_slice %18 {offsets = [0, 8], sizes = [8, 8], strides = [1, 1]} : vector<8x32xf32> to vector<8x8xf32>
    %45 = arith.truncf %44 : vector<8x8xf32> to vector<8x8xbf16>
    %46 = vector.extract_strided_slice %19 {offsets = [0, 8], sizes = [8, 8], strides = [1, 1]} : vector<8x32xf32> to vector<8x8xf32>
    %47 = arith.truncf %46 : vector<8x8xf32> to vector<8x8xbf16>
    %cst_16 = arith.constant dense<0.000000e+00> : vector<8x8xf32>
    %48 = tpu.matmul %43, %45, %cst_16 {dimension_numbers = #tpu.dot_dimension_numbers<[1], [1], [0], [0], [0, 0, 1, 0], [], []>} : vector<8x8xbf16>, vector<8x8xbf16>, vector<8x8xf32> -> vector<8x8xf32>
    %cst_17 = arith.constant 0.353553385 : f32
    %49 = vector.broadcast %cst_17 : f32 to vector<8x8xf32>
    %50 = arith.mulf %48, %49 : vector<8x8xf32>
    %51 = arith.addf %50, %16 : vector<8x8xf32>
    %cst_18 = arith.constant dense<0xFF800000> : vector<8xf32>
    %52 = vector.multi_reduction <maximumf>, %51, %cst_18 [1] : vector<8x8xf32> to vector<8xf32>
    %53 = vector.shape_cast %52 : vector<8xf32> to vector<8x1xf32>
    %54 = vector.broadcast %53 : vector<8x1xf32> to vector<8x8xf32>
    %55 = arith.subf %51, %54 : vector<8x8xf32>
    %56 = math.exp %55 : vector<8x8xf32>
    %cst_19 = arith.constant dense<0.000000e+00> : vector<8xf32>
    %57 = vector.multi_reduction <add>, %56, %cst_19 [1] : vector<8x8xf32> to vector<8xf32>
    %58 = vector.shape_cast %57 : vector<8xf32> to vector<8x1xf32>
    %59 = tpu.reciprocal %58 {approx = true} : vector<8x1xf32> -> vector<8x1xf32>
    %60 = vector.broadcast %59 : vector<8x1xf32> to vector<8x8xf32>
    %61 = arith.mulf %56, %60 : vector<8x8xf32>
    %62 = arith.truncf %61 : vector<8x8xf32> to vector<8x8xbf16>
    %cst_20 = arith.constant dense<0.000000e+00> : vector<8x8xf32>
    %63 = tpu.matmul %62, %47, %cst_20 {dimension_numbers = #tpu.dot_dimension_numbers<[1], [0], [0], [1], [0, 0, 1, 1], [], []>} : vector<8x8xbf16>, vector<8x8xbf16>, vector<8x8xf32> -> vector<8x8xf32>
    %64 = vector.extract_strided_slice %17 {offsets = [0, 16], sizes = [8, 8], strides = [1, 1]} : vector<8x32xf32> to vector<8x8xf32>
    %65 = arith.truncf %64 : vector<8x8xf32> to vector<8x8xbf16>
    %66 = vector.extract_strided_slice %18 {offsets = [0, 16], sizes = [8, 8], strides = [1, 1]} : vector<8x32xf32> to vector<8x8xf32>
    %67 = arith.truncf %66 : vector<8x8xf32> to vector<8x8xbf16>
    %68 = vector.extract_strided_slice %19 {offsets = [0, 16], sizes = [8, 8], strides = [1, 1]} : vector<8x32xf32> to vector<8x8xf32>
    %69 = arith.truncf %68 : vector<8x8xf32> to vector<8x8xbf16>
    %cst_21 = arith.constant dense<0.000000e+00> : vector<8x8xf32>
    %70 = tpu.matmul %65, %67, %cst_21 {dimension_numbers = #tpu.dot_dimension_numbers<[1], [1], [0], [0], [0, 0, 1, 0], [], []>} : vector<8x8xbf16>, vector<8x8xbf16>, vector<8x8xf32> -> vector<8x8xf32>
    %cst_22 = arith.constant 0.353553385 : f32
    %71 = vector.broadcast %cst_22 : f32 to vector<8x8xf32>
    %72 = arith.mulf %70, %71 : vector<8x8xf32>
    %73 = arith.addf %72, %16 : vector<8x8xf32>
    %cst_23 = arith.constant dense<0xFF800000> : vector<8xf32>
    %74 = vector.multi_reduction <maximumf>, %73, %cst_23 [1] : vector<8x8xf32> to vector<8xf32>
    %75 = vector.shape_cast %74 : vector<8xf32> to vector<8x1xf32>
    %76 = vector.broadcast %75 : vector<8x1xf32> to vector<8x8xf32>
    %77 = arith.subf %73, %76 : vector<8x8xf32>
    %78 = math.exp %77 : vector<8x8xf32>
    %cst_24 = arith.constant dense<0.000000e+00> : vector<8xf32>
    %79 = vector.multi_reduction <add>, %78, %cst_24 [1] : vector<8x8xf32> to vector<8xf32>
    %80 = vector.shape_cast %79 : vector<8xf32> to vector<8x1xf32>
    %81 = tpu.reciprocal %80 {approx = true} : vector<8x1xf32> -> vector<8x1xf32>
    %82 = vector.broadcast %81 : vector<8x1xf32> to vector<8x8xf32>
    %83 = arith.mulf %78, %82 : vector<8x8xf32>
    %84 = arith.truncf %83 : vector<8x8xf32> to vector<8x8xbf16>
    %cst_25 = arith.constant dense<0.000000e+00> : vector<8x8xf32>
    %85 = tpu.matmul %84, %69, %cst_25 {dimension_numbers = #tpu.dot_dimension_numbers<[1], [0], [0], [1], [0, 0, 1, 1], [], []>} : vector<8x8xbf16>, vector<8x8xbf16>, vector<8x8xf32> -> vector<8x8xf32>
    %86 = vector.extract_strided_slice %17 {offsets = [0, 24], sizes = [8, 8], strides = [1, 1]} : vector<8x32xf32> to vector<8x8xf32>
    %87 = arith.truncf %86 : vector<8x8xf32> to vector<8x8xbf16>
    %88 = vector.extract_strided_slice %18 {offsets = [0, 24], sizes = [8, 8], strides = [1, 1]} : vector<8x32xf32> to vector<8x8xf32>
    %89 = arith.truncf %88 : vector<8x8xf32> to vector<8x8xbf16>
    %90 = vector.extract_strided_slice %19 {offsets = [0, 24], sizes = [8, 8], strides = [1, 1]} : vector<8x32xf32> to vector<8x8xf32>
    %91 = arith.truncf %90 : vector<8x8xf32> to vector<8x8xbf16>
    %cst_26 = arith.constant dense<0.000000e+00> : vector<8x8xf32>
    %92 = tpu.matmul %87, %89, %cst_26 {dimension_numbers = #tpu.dot_dimension_numbers<[1], [1], [0], [0], [0, 0, 1, 0], [], []>} : vector<8x8xbf16>, vector<8x8xbf16>, vector<8x8xf32> -> vector<8x8xf32>
    %cst_27 = arith.constant 0.353553385 : f32
    %93 = vector.broadcast %cst_27 : f32 to vector<8x8xf32>
    %94 = arith.mulf %92, %93 : vector<8x8xf32>
    %95 = arith.addf %94, %16 : vector<8x8xf32>
    %cst_28 = arith.constant dense<0xFF800000> : vector<8xf32>
    %96 = vector.multi_reduction <maximumf>, %95, %cst_28 [1] : vector<8x8xf32> to vector<8xf32>
    %97 = vector.shape_cast %96 : vector<8xf32> to vector<8x1xf32>
    %98 = vector.broadcast %97 : vector<8x1xf32> to vector<8x8xf32>
    %99 = arith.subf %95, %98 : vector<8x8xf32>
    %100 = math.exp %99 : vector<8x8xf32>
    %cst_29 = arith.constant dense<0.000000e+00> : vector<8xf32>
    %101 = vector.multi_reduction <add>, %100, %cst_29 [1] : vector<8x8xf32> to vector<8xf32>
    %102 = vector.shape_cast %101 : vector<8xf32> to vector<8x1xf32>
    %103 = tpu.reciprocal %102 {approx = true} : vector<8x1xf32> -> vector<8x1xf32>
    %104 = vector.broadcast %103 : vector<8x1xf32> to vector<8x8xf32>
    %105 = arith.mulf %100, %104 : vector<8x8xf32>
    %106 = arith.truncf %105 : vector<8x8xf32> to vector<8x8xbf16>
    %cst_30 = arith.constant dense<0.000000e+00> : vector<8x8xf32>
    %107 = tpu.matmul %106, %91, %cst_30 {dimension_numbers = #tpu.dot_dimension_numbers<[1], [0], [0], [1], [0, 0, 1, 1], [], []>} : vector<8x8xbf16>, vector<8x8xbf16>, vector<8x8xf32> -> vector<8x8xf32>
    %108 = tpu.concatenate %41, %63, %85, %107 in 1 : vector<8x8xf32>, vector<8x8xf32>, vector<8x8xf32>, vector<8x8xf32> -> vector<8x32xf32>
    %109 = arith.truncf %108 : vector<8x32xf32> to vector<8x32xbf16>
    %c0_31 = arith.constant 0 : index
    %c0_32 = arith.constant 0 : index
    %110 = vector.load %arg5[%c0_31, %c0_32] : memref<32x32xbf16, #tpu.memory_space<vmem>>, vector<32x32xbf16>
    %c0_33 = arith.constant 0 : index
    %c0_34 = arith.constant 0 : index
    %111 = vector.load %arg6[%c0_33, %c0_34] : memref<1x32xf32, #tpu.memory_space<vmem>>, vector<1x32xf32>
    %cst_35 = arith.constant dense<0.000000e+00> : vector<8x32xf32>
    %112 = tpu.matmul %109, %110, %cst_35 {dimension_numbers = #tpu.dot_dimension_numbers<[1], [0], [0], [1], [0, 0, 1, 1], [], []>} : vector<8x32xbf16>, vector<32x32xbf16>, vector<8x32xf32> -> vector<8x32xf32>
    %113 = vector.broadcast %111 : vector<1x32xf32> to vector<8x32xf32>
    %114 = arith.addf %112, %113 : vector<8x32xf32>
    %115 = arith.addf %114, %1 : vector<8x32xf32>
    %cst_36 = arith.constant dense<0.000000e+00> : vector<8xf32>
    %116 = vector.multi_reduction <add>, %115, %cst_36 [1] : vector<8x32xf32> to vector<8xf32>
    %117 = vector.shape_cast %116 : vector<8xf32> to vector<8x1xf32>
    %cst_37 = arith.constant 3.200000e+01 : f32
    %118 = vector.broadcast %cst_37 : f32 to vector<8x1xf32>
    %119 = arith.divf %117, %118 : vector<8x1xf32>
    %120 = vector.broadcast %119 : vector<8x1xf32> to vector<8x32xf32>
    %121 = arith.subf %115, %120 : vector<8x32xf32>
    %122 = arith.mulf %121, %121 : vector<8x32xf32>
    %cst_38 = arith.constant dense<0.000000e+00> : vector<8xf32>
    %123 = vector.multi_reduction <add>, %122, %cst_38 [1] : vector<8x32xf32> to vector<8xf32>
    %124 = vector.shape_cast %123 : vector<8xf32> to vector<8x1xf32>
    %cst_39 = arith.constant 3.200000e+01 : f32
    %125 = vector.broadcast %cst_39 : f32 to vector<8x1xf32>
    %126 = arith.divf %124, %125 : vector<8x1xf32>
    %127 = vector.broadcast %119 : vector<8x1xf32> to vector<8x32xf32>
    %128 = arith.subf %115, %127 : vector<8x32xf32>
    %cst_40 = arith.constant 9.99999974E-6 : f32
    %129 = vector.broadcast %cst_40 : f32 to vector<8x1xf32>
    %130 = arith.addf %126, %129 : vector<8x1xf32>
    %131 = math.rsqrt %130 : vector<8x1xf32>
    %132 = vector.broadcast %131 : vector<8x1xf32> to vector<8x32xf32>
    %133 = arith.mulf %128, %132 : vector<8x32xf32>
    %c0_41 = arith.constant 0 : index
    %c0_42 = arith.constant 0 : index
    %134 = vector.load %arg11[%c0_41, %c0_42] : memref<1x32xf32, #tpu.memory_space<vmem>>, vector<1x32xf32>
    %135 = vector.broadcast %134 : vector<1x32xf32> to vector<8x32xf32>
    %136 = arith.mulf %133, %135 : vector<8x32xf32>
    %c0_43 = arith.constant 0 : index
    %c0_44 = arith.constant 0 : index
    %137 = vector.load %arg12[%c0_43, %c0_44] : memref<1x32xf32, #tpu.memory_space<vmem>>, vector<1x32xf32>
    %138 = vector.broadcast %137 : vector<1x32xf32> to vector<8x32xf32>
    %139 = arith.addf %136, %138 : vector<8x32xf32>
    %c0_45 = arith.constant 0 : index
    %c0_46 = arith.constant 0 : index
    %140 = vector.load %arg7[%c0_45, %c0_46] : memref<32x96xbf16, #tpu.memory_space<vmem>>, vector<32x96xbf16>
    %141 = vector.extract_strided_slice %140 {offsets = [0, 0], sizes = [32, 32], strides = [1, 1]} : vector<32x96xbf16> to vector<32x32xbf16>
    %c0_47 = arith.constant 0 : index
    %c0_48 = arith.constant 0 : index
    %142 = vector.load %arg8[%c0_47, %c0_48] : memref<1x96xf32, #tpu.memory_space<vmem>>, vector<1x32xf32>
    %cst_49 = arith.constant dense<0.000000e+00> : vector<8x32xf32>
    %143 = tpu.matmul %4, %141, %cst_49 {dimension_numbers = #tpu.dot_dimension_numbers<[1], [0], [0], [1], [0, 0, 1, 1], [], []>} : vector<8x32xbf16>, vector<32x32xbf16>, vector<8x32xf32> -> vector<8x32xf32>
    %144 = vector.broadcast %142 : vector<1x32xf32> to vector<8x32xf32>
    %145 = arith.addf %143, %144 : vector<8x32xf32>
    %146 = vector.extract_strided_slice %140 {offsets = [0, 32], sizes = [32, 64], strides = [1, 1]} : vector<32x96xbf16> to vector<32x64xbf16>
    %c0_50 = arith.constant 0 : index
    %c32 = arith.constant 32 : index
    %147 = vector.load %arg8[%c0_50, %c32] : memref<1x96xf32, #tpu.memory_space<vmem>>, vector<1x64xf32>
    %cst_51 = arith.constant dense<0.000000e+00> : vector<12x64xf32>
    %148 = tpu.matmul %5, %146, %cst_51 {dimension_numbers = #tpu.dot_dimension_numbers<[1], [0], [0], [1], [0, 0, 1, 1], [], []>} : vector<12x32xbf16>, vector<32x64xbf16>, vector<12x64xf32> -> vector<12x64xf32>
    %149 = vector.broadcast %147 : vector<1x64xf32> to vector<12x64xf32>
    %150 = arith.addf %148, %149 : vector<12x64xf32>
    %151 = vector.extract_strided_slice %150 {offsets = [0, 0], sizes = [12, 32], strides = [1, 1]} : vector<12x64xf32> to vector<12x32xf32>
    %152 = vector.extract_strided_slice %150 {offsets = [0, 32], sizes = [12, 32], strides = [1, 1]} : vector<12x64xf32> to vector<12x32xf32>
    %153 = vector.extract_strided_slice %145 {offsets = [0, 0], sizes = [8, 8], strides = [1, 1]} : vector<8x32xf32> to vector<8x8xf32>
    %154 = arith.truncf %153 : vector<8x8xf32> to vector<8x8xbf16>
    %155 = vector.extract_strided_slice %151 {offsets = [0, 0], sizes = [12, 8], strides = [1, 1]} : vector<12x32xf32> to vector<12x8xf32>
    %156 = arith.truncf %155 : vector<12x8xf32> to vector<12x8xbf16>
    %157 = vector.extract_strided_slice %152 {offsets = [0, 0], sizes = [12, 8], strides = [1, 1]} : vector<12x32xf32> to vector<12x8xf32>
    %158 = arith.truncf %157 : vector<12x8xf32> to vector<12x8xbf16>
    %cst_52 = arith.constant dense<0.000000e+00> : vector<8x12xf32>
    %159 = tpu.matmul %154, %156, %cst_52 {dimension_numbers = #tpu.dot_dimension_numbers<[1], [1], [0], [0], [0, 0, 1, 0], [], []>} : vector<8x8xbf16>, vector<12x8xbf16>, vector<8x12xf32> -> vector<8x12xf32>
    %cst_53 = arith.constant 0.353553385 : f32
    %160 = vector.broadcast %cst_53 : f32 to vector<8x12xf32>
    %161 = arith.mulf %159, %160 : vector<8x12xf32>
    %cst_54 = arith.constant dense<0xFF800000> : vector<8xf32>
    %162 = vector.multi_reduction <maximumf>, %161, %cst_54 [1] : vector<8x12xf32> to vector<8xf32>
    %163 = vector.shape_cast %162 : vector<8xf32> to vector<8x1xf32>
    %164 = vector.broadcast %163 : vector<8x1xf32> to vector<8x12xf32>
    %165 = arith.subf %161, %164 : vector<8x12xf32>
    %166 = math.exp %165 : vector<8x12xf32>
    %cst_55 = arith.constant dense<0.000000e+00> : vector<8xf32>
    %167 = vector.multi_reduction <add>, %166, %cst_55 [1] : vector<8x12xf32> to vector<8xf32>
    %168 = vector.shape_cast %167 : vector<8xf32> to vector<8x1xf32>
    %169 = tpu.reciprocal %168 {approx = true} : vector<8x1xf32> -> vector<8x1xf32>
    %170 = vector.broadcast %169 : vector<8x1xf32> to vector<8x12xf32>
    %171 = arith.mulf %166, %170 : vector<8x12xf32>
    %172 = arith.truncf %171 : vector<8x12xf32> to vector<8x12xbf16>
    %cst_56 = arith.constant dense<0.000000e+00> : vector<8x8xf32>
    %173 = tpu.matmul %172, %158, %cst_56 {dimension_numbers = #tpu.dot_dimension_numbers<[1], [0], [0], [1], [0, 0, 1, 1], [], []>} : vector<8x12xbf16>, vector<12x8xbf16>, vector<8x8xf32> -> vector<8x8xf32>
    %174 = vector.extract_strided_slice %145 {offsets = [0, 8], sizes = [8, 8], strides = [1, 1]} : vector<8x32xf32> to vector<8x8xf32>
    %175 = arith.truncf %174 : vector<8x8xf32> to vector<8x8xbf16>
    %176 = vector.extract_strided_slice %151 {offsets = [0, 8], sizes = [12, 8], strides = [1, 1]} : vector<12x32xf32> to vector<12x8xf32>
    %177 = arith.truncf %176 : vector<12x8xf32> to vector<12x8xbf16>
    %178 = vector.extract_strided_slice %152 {offsets = [0, 8], sizes = [12, 8], strides = [1, 1]} : vector<12x32xf32> to vector<12x8xf32>
    %179 = arith.truncf %178 : vector<12x8xf32> to vector<12x8xbf16>
    %cst_57 = arith.constant dense<0.000000e+00> : vector<8x12xf32>
    %180 = tpu.matmul %175, %177, %cst_57 {dimension_numbers = #tpu.dot_dimension_numbers<[1], [1], [0], [0], [0, 0, 1, 0], [], []>} : vector<8x8xbf16>, vector<12x8xbf16>, vector<8x12xf32> -> vector<8x12xf32>
    %cst_58 = arith.constant 0.353553385 : f32
    %181 = vector.broadcast %cst_58 : f32 to vector<8x12xf32>
    %182 = arith.mulf %180, %181 : vector<8x12xf32>
    %cst_59 = arith.constant dense<0xFF800000> : vector<8xf32>
    %183 = vector.multi_reduction <maximumf>, %182, %cst_59 [1] : vector<8x12xf32> to vector<8xf32>
    %184 = vector.shape_cast %183 : vector<8xf32> to vector<8x1xf32>
    %185 = vector.broadcast %184 : vector<8x1xf32> to vector<8x12xf32>
    %186 = arith.subf %182, %185 : vector<8x12xf32>
    %187 = math.exp %186 : vector<8x12xf32>
    %cst_60 = arith.constant dense<0.000000e+00> : vector<8xf32>
    %188 = vector.multi_reduction <add>, %187, %cst_60 [1] : vector<8x12xf32> to vector<8xf32>
    %189 = vector.shape_cast %188 : vector<8xf32> to vector<8x1xf32>
    %190 = tpu.reciprocal %189 {approx = true} : vector<8x1xf32> -> vector<8x1xf32>
    %191 = vector.broadcast %190 : vector<8x1xf32> to vector<8x12xf32>
    %192 = arith.mulf %187, %191 : vector<8x12xf32>
    %193 = arith.truncf %192 : vector<8x12xf32> to vector<8x12xbf16>
    %cst_61 = arith.constant dense<0.000000e+00> : vector<8x8xf32>
    %194 = tpu.matmul %193, %179, %cst_61 {dimension_numbers = #tpu.dot_dimension_numbers<[1], [0], [0], [1], [0, 0, 1, 1], [], []>} : vector<8x12xbf16>, vector<12x8xbf16>, vector<8x8xf32> -> vector<8x8xf32>
    %195 = vector.extract_strided_slice %145 {offsets = [0, 16], sizes = [8, 8], strides = [1, 1]} : vector<8x32xf32> to vector<8x8xf32>
    %196 = arith.truncf %195 : vector<8x8xf32> to vector<8x8xbf16>
    %197 = vector.extract_strided_slice %151 {offsets = [0, 16], sizes = [12, 8], strides = [1, 1]} : vector<12x32xf32> to vector<12x8xf32>
    %198 = arith.truncf %197 : vector<12x8xf32> to vector<12x8xbf16>
    %199 = vector.extract_strided_slice %152 {offsets = [0, 16], sizes = [12, 8], strides = [1, 1]} : vector<12x32xf32> to vector<12x8xf32>
    %200 = arith.truncf %199 : vector<12x8xf32> to vector<12x8xbf16>
    %cst_62 = arith.constant dense<0.000000e+00> : vector<8x12xf32>
    %201 = tpu.matmul %196, %198, %cst_62 {dimension_numbers = #tpu.dot_dimension_numbers<[1], [1], [0], [0], [0, 0, 1, 0], [], []>} : vector<8x8xbf16>, vector<12x8xbf16>, vector<8x12xf32> -> vector<8x12xf32>
    %cst_63 = arith.constant 0.353553385 : f32
    %202 = vector.broadcast %cst_63 : f32 to vector<8x12xf32>
    %203 = arith.mulf %201, %202 : vector<8x12xf32>
    %cst_64 = arith.constant dense<0xFF800000> : vector<8xf32>
    %204 = vector.multi_reduction <maximumf>, %203, %cst_64 [1] : vector<8x12xf32> to vector<8xf32>
    %205 = vector.shape_cast %204 : vector<8xf32> to vector<8x1xf32>
    %206 = vector.broadcast %205 : vector<8x1xf32> to vector<8x12xf32>
    %207 = arith.subf %203, %206 : vector<8x12xf32>
    %208 = math.exp %207 : vector<8x12xf32>
    %cst_65 = arith.constant dense<0.000000e+00> : vector<8xf32>
    %209 = vector.multi_reduction <add>, %208, %cst_65 [1] : vector<8x12xf32> to vector<8xf32>
    %210 = vector.shape_cast %209 : vector<8xf32> to vector<8x1xf32>
    %211 = tpu.reciprocal %210 {approx = true} : vector<8x1xf32> -> vector<8x1xf32>
    %212 = vector.broadcast %211 : vector<8x1xf32> to vector<8x12xf32>
    %213 = arith.mulf %208, %212 : vector<8x12xf32>
    %214 = arith.truncf %213 : vector<8x12xf32> to vector<8x12xbf16>
    %cst_66 = arith.constant dense<0.000000e+00> : vector<8x8xf32>
    %215 = tpu.matmul %214, %200, %cst_66 {dimension_numbers = #tpu.dot_dimension_numbers<[1], [0], [0], [1], [0, 0, 1, 1], [], []>} : vector<8x12xbf16>, vector<12x8xbf16>, vector<8x8xf32> -> vector<8x8xf32>
    %216 = vector.extract_strided_slice %145 {offsets = [0, 24], sizes = [8, 8], strides = [1, 1]} : vector<8x32xf32> to vector<8x8xf32>
    %217 = arith.truncf %216 : vector<8x8xf32> to vector<8x8xbf16>
    %218 = vector.extract_strided_slice %151 {offsets = [0, 24], sizes = [12, 8], strides = [1, 1]} : vector<12x32xf32> to vector<12x8xf32>
    %219 = arith.truncf %218 : vector<12x8xf32> to vector<12x8xbf16>
    %220 = vector.extract_strided_slice %152 {offsets = [0, 24], sizes = [12, 8], strides = [1, 1]} : vector<12x32xf32> to vector<12x8xf32>
    %221 = arith.truncf %220 : vector<12x8xf32> to vector<12x8xbf16>
    %cst_67 = arith.constant dense<0.000000e+00> : vector<8x12xf32>
    %222 = tpu.matmul %217, %219, %cst_67 {dimension_numbers = #tpu.dot_dimension_numbers<[1], [1], [0], [0], [0, 0, 1, 0], [], []>} : vector<8x8xbf16>, vector<12x8xbf16>, vector<8x12xf32> -> vector<8x12xf32>
    %cst_68 = arith.constant 0.353553385 : f32
    %223 = vector.broadcast %cst_68 : f32 to vector<8x12xf32>
    %224 = arith.mulf %222, %223 : vector<8x12xf32>
    %cst_69 = arith.constant dense<0xFF800000> : vector<8xf32>
    %225 = vector.multi_reduction <maximumf>, %224, %cst_69 [1] : vector<8x12xf32> to vector<8xf32>
    %226 = vector.shape_cast %225 : vector<8xf32> to vector<8x1xf32>
    %227 = vector.broadcast %226 : vector<8x1xf32> to vector<8x12xf32>
    %228 = arith.subf %224, %227 : vector<8x12xf32>
    %229 = math.exp %228 : vector<8x12xf32>
    %cst_70 = arith.constant dense<0.000000e+00> : vector<8xf32>
    %230 = vector.multi_reduction <add>, %229, %cst_70 [1] : vector<8x12xf32> to vector<8xf32>
    %231 = vector.shape_cast %230 : vector<8xf32> to vector<8x1xf32>
    %232 = tpu.reciprocal %231 {approx = true} : vector<8x1xf32> -> vector<8x1xf32>
    %233 = vector.broadcast %232 : vector<8x1xf32> to vector<8x12xf32>
    %234 = arith.mulf %229, %233 : vector<8x12xf32>
    %235 = arith.truncf %234 : vector<8x12xf32> to vector<8x12xbf16>
    %cst_71 = arith.constant dense<0.000000e+00> : vector<8x8xf32>
    %236 = tpu.matmul %235, %221, %cst_71 {dimension_numbers = #tpu.dot_dimension_numbers<[1], [0], [0], [1], [0, 0, 1, 1], [], []>} : vector<8x12xbf16>, vector<12x8xbf16>, vector<8x8xf32> -> vector<8x8xf32>
    %237 = tpu.concatenate %173, %194, %215, %236 in 1 : vector<8x8xf32>, vector<8x8xf32>, vector<8x8xf32>, vector<8x8xf32> -> vector<8x32xf32>
    %238 = arith.truncf %237 : vector<8x32xf32> to vector<8x32xbf16>
    %c0_72 = arith.constant 0 : index
    %c0_73 = arith.constant 0 : index
    %239 = vector.load %arg9[%c0_72, %c0_73] : memref<32x32xbf16, #tpu.memory_space<vmem>>, vector<32x32xbf16>
    %c0_74 = arith.constant 0 : index
    %c0_75 = arith.constant 0 : index
    %240 = vector.load %arg10[%c0_74, %c0_75] : memref<1x32xf32, #tpu.memory_space<vmem>>, vector<1x32xf32>
    %cst_76 = arith.constant dense<0.000000e+00> : vector<8x32xf32>
    %241 = tpu.matmul %238, %239, %cst_76 {dimension_numbers = #tpu.dot_dimension_numbers<[1], [0], [0], [1], [0, 0, 1, 1], [], []>} : vector<8x32xbf16>, vector<32x32xbf16>, vector<8x32xf32> -> vector<8x32xf32>
    %242 = vector.broadcast %240 : vector<1x32xf32> to vector<8x32xf32>
    %243 = arith.addf %241, %242 : vector<8x32xf32>
    %244 = arith.addf %243, %139 : vector<8x32xf32>
    %cst_77 = arith.constant dense<0.000000e+00> : vector<8xf32>
    %245 = vector.multi_reduction <add>, %244, %cst_77 [1] : vector<8x32xf32> to vector<8xf32>
    %246 = vector.shape_cast %245 : vector<8xf32> to vector<8x1xf32>
    %cst_78 = arith.constant 3.200000e+01 : f32
    %247 = vector.broadcast %cst_78 : f32 to vector<8x1xf32>
    %248 = arith.divf %246, %247 : vector<8x1xf32>
    %249 = vector.broadcast %248 : vector<8x1xf32> to vector<8x32xf32>
    %250 = arith.subf %244, %249 : vector<8x32xf32>
    %251 = arith.mulf %250, %250 : vector<8x32xf32>
    %cst_79 = arith.constant dense<0.000000e+00> : vector<8xf32>
    %252 = vector.multi_reduction <add>, %251, %cst_79 [1] : vector<8x32xf32> to vector<8xf32>
    %253 = vector.shape_cast %252 : vector<8xf32> to vector<8x1xf32>
    %cst_80 = arith.constant 3.200000e+01 : f32
    %254 = vector.broadcast %cst_80 : f32 to vector<8x1xf32>
    %255 = arith.divf %253, %254 : vector<8x1xf32>
    %256 = vector.broadcast %248 : vector<8x1xf32> to vector<8x32xf32>
    %257 = arith.subf %244, %256 : vector<8x32xf32>
    %cst_81 = arith.constant 9.99999974E-6 : f32
    %258 = vector.broadcast %cst_81 : f32 to vector<8x1xf32>
    %259 = arith.addf %255, %258 : vector<8x1xf32>
    %260 = math.rsqrt %259 : vector<8x1xf32>
    %261 = vector.broadcast %260 : vector<8x1xf32> to vector<8x32xf32>
    %262 = arith.mulf %257, %261 : vector<8x32xf32>
    %c0_82 = arith.constant 0 : index
    %c0_83 = arith.constant 0 : index
    %263 = vector.load %arg11[%c0_82, %c0_83] : memref<1x32xf32, #tpu.memory_space<vmem>>, vector<1x32xf32>
    %264 = vector.broadcast %263 : vector<1x32xf32> to vector<8x32xf32>
    %265 = arith.mulf %262, %264 : vector<8x32xf32>
    %c0_84 = arith.constant 0 : index
    %c0_85 = arith.constant 0 : index
    %266 = vector.load %arg12[%c0_84, %c0_85] : memref<1x32xf32, #tpu.memory_space<vmem>>, vector<1x32xf32>
    %267 = vector.broadcast %266 : vector<1x32xf32> to vector<8x32xf32>
    %268 = arith.addf %265, %267 : vector<8x32xf32>
    %269 = arith.truncf %268 : vector<8x32xf32> to vector<8x32xbf16>
    %c0_86 = arith.constant 0 : index
    %c0_87 = arith.constant 0 : index
    %270 = vector.load %arg13[%c0_86, %c0_87] : memref<32x64xbf16, #tpu.memory_space<vmem>>, vector<32x64xbf16>
    %c0_88 = arith.constant 0 : index
    %c0_89 = arith.constant 0 : index
    %271 = vector.load %arg14[%c0_88, %c0_89] : memref<1x64xf32, #tpu.memory_space<vmem>>, vector<1x64xf32>
    %cst_90 = arith.constant dense<0.000000e+00> : vector<8x64xf32>
    %272 = tpu.matmul %269, %270, %cst_90 {dimension_numbers = #tpu.dot_dimension_numbers<[1], [0], [0], [1], [0, 0, 1, 1], [], []>} : vector<8x32xbf16>, vector<32x64xbf16>, vector<8x64xf32> -> vector<8x64xf32>
    %273 = vector.broadcast %271 : vector<1x64xf32> to vector<8x64xf32>
    %274 = arith.addf %272, %273 : vector<8x64xf32>
    %cst_91 = arith.constant 0.000000e+00 : f32
    %275 = vector.broadcast %cst_91 : f32 to vector<8x64xf32>
    %276 = arith.maximumf %274, %275 : vector<8x64xf32>
    %277 = arith.truncf %276 : vector<8x64xf32> to vector<8x64xbf16>
    %c0_92 = arith.constant 0 : index
    %c0_93 = arith.constant 0 : index
    %278 = vector.load %arg15[%c0_92, %c0_93] : memref<64x32xbf16, #tpu.memory_space<vmem>>, vector<64x32xbf16>
    %c0_94 = arith.constant 0 : index
    %c0_95 = arith.constant 0 : index
    %279 = vector.load %arg16[%c0_94, %c0_95] : memref<1x32xf32, #tpu.memory_space<vmem>>, vector<1x32xf32>
    %cst_96 = arith.constant dense<0.000000e+00> : vector<8x32xf32>
    %280 = tpu.matmul %277, %278, %cst_96 {dimension_numbers = #tpu.dot_dimension_numbers<[1], [0], [0], [1], [0, 0, 1, 1], [], []>} : vector<8x64xbf16>, vector<64x32xbf16>, vector<8x32xf32> -> vector<8x32xf32>
    %281 = vector.broadcast %279 : vector<1x32xf32> to vector<8x32xf32>
    %282 = arith.addf %280, %281 : vector<8x32xf32>
    %283 = arith.addf %282, %268 : vector<8x32xf32>
    %cst_97 = arith.constant dense<0.000000e+00> : vector<8xf32>
    %284 = vector.multi_reduction <add>, %283, %cst_97 [1] : vector<8x32xf32> to vector<8xf32>
    %285 = vector.shape_cast %284 : vector<8xf32> to vector<8x1xf32>
    %cst_98 = arith.constant 3.200000e+01 : f32
    %286 = vector.broadcast %cst_98 : f32 to vector<8x1xf32>
    %287 = arith.divf %285, %286 : vector<8x1xf32>
    %288 = vector.broadcast %287 : vector<8x1xf32> to vector<8x32xf32>
    %289 = arith.subf %283, %288 : vector<8x32xf32>
    %290 = arith.mulf %289, %289 : vector<8x32xf32>
    %cst_99 = arith.constant dense<0.000000e+00> : vector<8xf32>
    %291 = vector.multi_reduction <add>, %290, %cst_99 [1] : vector<8x32xf32> to vector<8xf32>
    %292 = vector.shape_cast %291 : vector<8xf32> to vector<8x1xf32>
    %cst_100 = arith.constant 3.200000e+01 : f32
    %293 = vector.broadcast %cst_100 : f32 to vector<8x1xf32>
    %294 = arith.divf %292, %293 : vector<8x1xf32>
    %295 = vector.broadcast %287 : vector<8x1xf32> to vector<8x32xf32>
    %296 = arith.subf %283, %295 : vector<8x32xf32>
    %cst_101 = arith.constant 9.99999974E-6 : f32
    %297 = vector.broadcast %cst_101 : f32 to vector<8x1xf32>
    %298 = arith.addf %294, %297 : vector<8x1xf32>
    %299 = math.rsqrt %298 : vector<8x1xf32>
    %300 = vector.broadcast %299 : vector<8x1xf32> to vector<8x32xf32>
    %301 = arith.mulf %296, %300 : vector<8x32xf32>
    %c0_102 = arith.constant 0 : index
    %c0_103 = arith.constant 0 : index
    %302 = vector.load %arg11[%c0_102, %c0_103] : memref<1x32xf32, #tpu.memory_space<vmem>>, vector<1x32xf32>
    %303 = vector.broadcast %302 : vector<1x32xf32> to vector<8x32xf32>
    %304 = arith.mulf %301, %303 : vector<8x32xf32>
    %c0_104 = arith.constant 0 : index
    %c0_105 = arith.constant 0 : index
    %305 = vector.load %arg12[%c0_104, %c0_105] : memref<1x32xf32, #tpu.memory_space<vmem>>, vector<1x32xf32>
    %306 = vector.broadcast %305 : vector<1x32xf32> to vector<8x32xf32>
    %307 = arith.addf %304, %306 : vector<8x32xf32>
    %c0_106 = arith.constant 0 : index
    %c0_107 = arith.constant 0 : index
    %c0_108 = arith.constant 0 : index
    %308 = vector.load %arg17[%c0_106, %c0_107, %c0_108] : memref<1x8x32xf32, #tpu.memory_space<vmem>>, vector<1x8x32xf32>
    %309 = vector.shape_cast %308 : vector<1x8x32xf32> to vector<8x32xf32>
    %310 = vector.shape_cast %307 : vector<8x32xf32> to vector<1x8x32xf32>
    tpu.vector_store %arg17[%c0_106, %c0_107, %c0_108], %310 {strides = array<i32>} : memref<1x8x32xf32, #tpu.memory_space<vmem>>, vector<1x8x32xf32>,
    return
  }
  func.func @transform_0(%arg0: i32) -> (i32, i32, i32) {
    %c0_i32 = arith.constant 0 : i32
    %c0_i32_0 = arith.constant 0 : i32
    %c0_i32_1 = arith.constant 0 : i32
    return %arg0, %c0_i32, %c0_i32_0 : i32, i32, i32
  }
  func.func @transform_1(%arg0: i32) -> (i32, i32, i32) {
    %c0_i32 = arith.constant 0 : i32
    %c0_i32_0 = arith.constant 0 : i32
    %c0_i32_1 = arith.constant 0 : i32
    return %arg0, %c0_i32, %c0_i32_0 : i32, i32, i32
  }
  func.func @transform_2(%arg0: i32) -> (i32, i32) {
    %c0_i32 = arith.constant 0 : i32
    %c0_i32_0 = arith.constant 0 : i32
    %c0_i32_1 = arith.constant 0 : i32
    return %c0_i32, %c0_i32_0 : i32, i32
  }
  func.func @transform_3(%arg0: i32) -> (i32, i32) {
    %c0_i32 = arith.constant 0 : i32
    %c0_i32_0 = arith.constant 0 : i32
    %c0_i32_1 = arith.constant 0 : i32
    return %c0_i32, %c0_i32_0 : i32, i32
  }
  func.func @transform_4(%arg0: i32) -> (i32, i32) {
    %c0_i32 = arith.constant 0 : i32
    %c0_i32_0 = arith.constant 0 : i32
    %c0_i32_1 = arith.constant 0 : i32
    return %c0_i32, %c0_i32_0 : i32, i32
  }
  func.func @transform_5(%arg0: i32) -> (i32, i32) {
    %c0_i32 = arith.constant 0 : i32
    %c0_i32_0 = arith.constant 0 : i32
    %c0_i32_1 = arith.constant 0 : i32
    return %c0_i32, %c0_i32_0 : i32, i32
  }
  func.func @transform_6(%arg0: i32) -> (i32, i32) {
    %c0_i32 = arith.constant 0 : i32
    %c0_i32_0 = arith.constant 0 : i32
    %c0_i32_1 = arith.constant 0 : i32
    return %c0_i32, %c0_i32_0 : i32, i32
  }
  func.func @transform_7(%arg0: i32) -> (i32, i32) {
    %c0_i32 = arith.constant 0 : i32
    %c0_i32_0 = arith.constant 0 : i32
    %c0_i32_1 = arith.constant 0 : i32
    return %c0_i32, %c0_i32_0 : i32, i32
  }
  func.func @transform_8(%arg0: i32) -> (i32, i32) {
    %c0_i32 = arith.constant 0 : i32
    %c0_i32_0 = arith.constant 0 : i32
    %c0_i32_1 = arith.constant 0 : i32
    return %c0_i32, %c0_i32_0 : i32, i32
  }
  func.func @transform_9(%arg0: i32) -> (i32, i32) {
    %c0_i32 = arith.constant 0 : i32
    %c0_i32_0 = arith.constant 0 : i32
    %c0_i32_1 = arith.constant 0 : i32
    return %c0_i32, %c0_i32_0 : i32, i32
  }
  func.func @transform_10(%arg0: i32) -> (i32, i32) {
    %c0_i32 = arith.constant 0 : i32
    %c0_i32_0 = arith.constant 0 : i32
    %c0_i32_1 = arith.constant 0 : i32
    return %c0_i32, %c0_i32_0 : i32, i32
  }
  func.func @transform_11(%arg0: i32) -> (i32, i32) {
    %c0_i32 = arith.constant 0 : i32
    %c0_i32_0 = arith.constant 0 : i32
    %c0_i32_1 = arith.constant 0 : i32
    return %c0_i32, %c0_i32_0 : i32, i32
  }
  func.func @transform_12(%arg0: i32) -> (i32, i32) {
    %c0_i32 = arith.constant 0 : i32
    %c0_i32_0 = arith.constant 0 : i32
    %c0_i32_1 = arith.constant 0 : i32
    return %c0_i32, %c0_i32_0 : i32, i32
  }
  func.func @transform_13(%arg0: i32) -> (i32, i32) {
    %c0_i32 = arith.constant 0 : i32
    %c0_i32_0 = arith.constant 0 : i32
    %c0_i32_1 = arith.constant 0 : i32
    return %c0_i32, %c0_i32_0 : i32, i32
  }
  func.func @transform_14(%arg0: i32) -> (i32, i32) {
    %c0_i32 = arith.constant 0 : i32
    %c0_i32_0 = arith.constant 0 : i32
    %c0_i32_1 = arith.constant 0 : i32
    return %c0_i32, %c0_i32_0 : i32, i32
  }
  func.func @transform_15(%arg0: i32) -> (i32, i32) {
    %c0_i32 = arith.constant 0 : i32
    %c0_i32_0 = arith.constant 0 : i32
    %c0_i32_1 = arith.constant 0 : i32
    return %c0_i32, %c0_i32_0 : i32, i32
  }
  func.func @transform_16(%arg0: i32) -> (i32, i32, i32) {
    %c0_i32 = arith.constant 0 : i32
    %c0_i32_0 = arith.constant 0 : i32
    %c0_i32_1 = arith.constant 0 : i32
    return %arg0, %c0_i32, %c0_i32_0 : i32, i32, i32
  }
}

</mosaic_0001>

<llo_original>
// kernel: decoder_forward.1
$region0: #{decoder_forward.1}
  #allocation0 [shape = 'u32[]', space=smem, size = 0x4, offset = 0x4, fixed_abs, tag = 'smem constant byte address 0x4 - core index']
  #allocation1 [shape = 'u32[144,128]{1,0:T(1,128)}', space=vmem, size = 0x12000, scoped, tag = 'internal scratch']
  %s0 = inlined_call_operand.vmem [shape: f32[2,8,32], index: 0, kind: input, shape index: {}]
  %s1 = inlined_call_operand.vmem [shape: f32[2,12,32], index: 1, kind: input, shape index: {}]
  %s2 = inlined_call_operand.vmem [shape: bf16[32,96], index: 2, kind: input, shape index: {}]
  %s3 = inlined_call_operand.vmem [shape: f32[1,96], index: 3, kind: input, shape index: {}]
  %s4 = inlined_call_operand.vmem [shape: bf16[32,32], index: 4, kind: input, shape index: {}]
  %s5 = inlined_call_operand.vmem [shape: f32[1,32], index: 5, kind: input, shape index: {}]
  %s6 = inlined_call_operand.vmem [shape: bf16[32,96], index: 6, kind: input, shape index: {}]
  %s7 = inlined_call_operand.vmem [shape: f32[1,96], index: 7, kind: input, shape index: {}]
  %s8 = inlined_call_operand.vmem [shape: bf16[32,32], index: 8, kind: input, shape index: {}]
  %s9 = inlined_call_operand.vmem [shape: f32[1,32], index: 9, kind: input, shape index: {}]
  %s10 = inlined_call_operand.vmem [shape: f32[1,32], index: 10, kind: input, shape index: {}]
  %s11 = inlined_call_operand.vmem [shape: f32[1,32], index: 11, kind: input, shape index: {}]
  %s12 = inlined_call_operand.vmem [shape: bf16[32,64], index: 12, kind: input, shape index: {}]
  %s13 = inlined_call_operand.vmem [shape: f32[1,64], index: 13, kind: input, shape index: {}]
  %s14 = inlined_call_operand.vmem [shape: bf16[64,32], index: 14, kind: input, shape index: {}]
  %s15 = inlined_call_operand.vmem [shape: f32[1,32], index: 15, kind: input, shape index: {}]
  %s16 = inlined_call_operand.hbm [shape: f32[2,8,32], index: 16, kind: output, shape index: {}]
  %s17 = sld [smem:[#allocation0]]
  $region97: #{decoder_forward.1} parent=0
    _
  %s19 = ssub.s32 1, %s17
  %s20 = scalar_select 0, %s19, %s17
  $region1: #{decoder_forward.1} parent=0
    #allocation2 [shape = 'u8[8192]{0}', space=vmem, size = 0x2000, scoped, tag = 'output window, operand 0']
    #allocation3 [shape = 's32[2]{0}', space=sflag, size = 0x8, scoped, tag = 'scoped memory for decoder_forward.1']
    %21 = vsyncpa [#allocation3], 0
    %s22 = scalar_lea.sflag [#allocation3], 1
    %23 = vsyncpa %s22, 0
    loop: start=0, step=1, limit=4
    $region2: #{decoder_forward.1} parent=1 // loop_pre_header
      _
    $region3: #{decoder_forward.1} parent=1 // loop_header
      %s25 = sphi 0, %s29
      %p26 = scmp.ge.s32.totalorder %s25, 4
      %s35 = sphi 0, %s37
      %s38 = sphi 0, %s35
      %s39 = sphi 0, %s38
      %s55 = sphi 0, %s39
      %s61 = sphi 0, %s63
      %s64 = sphi 0, %s61
      %s65 = sphi 0, %s64
      %s81 = sphi 0, %s65
      %s85 = sphi 0, %s85
      %s87 = sphi 0, %s85
      %s88 = sphi 0, %s87
      %s102 = sphi 0, %s88
      %s106 = sphi 0, %s106
      %s108 = sphi 0, %s106
      %s109 = sphi 0, %s108
      %s123 = sphi 0, %s109
      %s127 = sphi 0, %s127
      %s129 = sphi 0, %s127
      %s130 = sphi 0, %s129
      %s144 = sphi 0, %s130
      %s148 = sphi 0, %s148
      %s150 = sphi 0, %s148
      %s151 = sphi 0, %s150
      %s165 = sphi 0, %s151
      %s169 = sphi 0, %s169
      %s171 = sphi 0, %s169
      %s172 = sphi 0, %s171
      %s186 = sphi 0, %s172
      %s190 = sphi 0, %s190
      %s192 = sphi 0, %s190
      %s193 = sphi 0, %s192
      %s207 = sphi 0, %s193
      %s211 = sphi 0, %s211
      %s213 = sphi 0, %s211
      %s214 = sphi 0, %s213
      %s228 = sphi 0, %s214
      %s232 = sphi 0, %s232
      %s234 = sphi 0, %s232
      %s235 = sphi 0, %s234
      %s249 = sphi 0, %s235
      %s253 = sphi 0, %s253
      %s255 = sphi 0, %s253
      %s256 = sphi 0, %s255
      %s270 = sphi 0, %s256
      %s274 = sphi 0, %s274
      %s276 = sphi 0, %s274
      %s277 = sphi 0, %s276
      %s291 = sphi 0, %s277
      %s295 = sphi 0, %s295
      %s297 = sphi 0, %s295
      %s298 = sphi 0, %s297
      %s312 = sphi 0, %s298
      %s316 = sphi 0, %s316
      %s318 = sphi 0, %s316
      %s319 = sphi 0, %s318
      %s333 = sphi 0, %s319
      %s337 = sphi 0, %s337
      %s339 = sphi 0, %s337
      %s340 = sphi 0, %s339
      %s354 = sphi 0, %s340
      %s358 = sphi 0, %s358
      %s360 = sphi 0, %s358
      %s361 = sphi 0, %s360
      %s375 = sphi 0, %s361
      %s381 = sphi 0, %s383
      %s384 = sphi 0, %s381
      %s385 = sphi 0, %s384
      %s401 = sphi 0, %s385
    $region4: #{decoder_forward.1} parent=1 // loop_header_branch
      %28 = sbr.rel (%p26) target = $region8
    $region5: #{decoder_forward.1} parent=1 // loop_body
      %s30 = ssub.s32 %s25, 1
      %s31 = ssub.s32 %s25, 2
      %s32 = sadd.s32 %s25, 1
      %s33 = ssub.s32 %s25, %s32
      %p34 = scmp.eq.s32.totalorder %s33, 0
      %s36 = sadd.s32 %s35, 1
      %s37 = scalar_select %p34, %s35, %s36
      %p40 = pneg %p34
      %p41 = scmp.eq.s32.totalorder %s25, 1
      %p42 = por %p40, %p41
      %p43 = scmp.ne.s32.totalorder %s35, %s38
      %p44 = scmp.eq.s32.totalorder %s25, 0
      %p45 = por %p43, %p44
      %p46 = scmp.ne.s32.totalorder %s35, %s38
      %p47 = scmp.eq.s32.totalorder %s30, 1
      %p48 = por %p46, %p47
      %p49 = scmp.ne.s32.totalorder %s38, %s39
      %p50 = scmp.eq.s32.totalorder %s30, 0
      %p51 = por %p49, %p50
      %p52 = scmp.ne.s32.totalorder %s38, %s39
      %p53 = scmp.eq.s32.totalorder %s31, 1
      %p54 = por %p52, %p53
      %p56 = scmp.ne.s32.totalorder %s39, %s55
      %p57 = scmp.eq.s32.totalorder %s31, 0
      %p58 = por %p56, %p57
      %s59 = ssub.s32 %s25, %s32
      %p60 = scmp.eq.s32.totalorder %s59, 0
      %s62 = sadd.s32 %s61, 1
      %s63 = scalar_select %p60, %s61, %s62
      %p66 = pneg %p60
      %p67 = scmp.eq.s32.totalorder %s25, 1
      %p68 = por %p66, %p67
      %p69 = scmp.ne.s32.totalorder %s61, %s64
      %p70 = scmp.eq.s32.totalorder %s25, 0
      %p71 = por %p69, %p70
      %p72 = scmp.ne.s32.totalorder %s61, %s64
      %p73 = scmp.eq.s32.totalorder %s30, 1
      %p74 = por %p72, %p73
      %p75 = scmp.ne.s32.totalorder %s64, %s65
      %p76 = scmp.eq.s32.totalorder %s30, 0
      %p77 = por %p75, %p76
      %p78 = scmp.ne.s32.totalorder %s64, %s65
      %p79 = scmp.eq.s32.totalorder %s31, 1
      %p80 = por %p78, %p79
      %p82 = scmp.ne.s32.totalorder %s65, %s81
      %p83 = scmp.eq.s32.totalorder %s31, 0
      %p84 = por %p82, %p83
      %s86 = sadd.s32 %s85, 1
      %p89 = scmp.eq.s32.totalorder %s25, 1
      %p90 = scmp.ne.s32.totalorder %s85, %s87
      %p91 = scmp.eq.s32.totalorder %s25, 0
      %p92 = por %p90, %p91
      %p93 = scmp.ne.s32.totalorder %s85, %s87
      %p94 = scmp.eq.s32.totalorder %s30, 1
      %p95 = por %p93, %p94
      %p96 = scmp.ne.s32.totalorder %s87, %s88
      %p97 = scmp.eq.s32.totalorder %s30, 0
      %p98 = por %p96, %p97
      %p99 = scmp.ne.s32.totalorder %s87, %s88
      %p100 = scmp.eq.s32.totalorder %s31, 1
      %p101 = por %p99, %p100
      %p103 = scmp.ne.s32.totalorder %s88, %s102
      %p104 = scmp.eq.s32.totalorder %s31, 0
      %p105 = por %p103, %p104
      %s107 = sadd.s32 %s106, 1
      %p110 = scmp.eq.s32.totalorder %s25, 1
      %p111 = scmp.ne.s32.totalorder %s106, %s108
      %p112 = scmp.eq.s32.totalorder %s25, 0
      %p113 = por %p111, %p112
      %p114 = scmp.ne.s32.totalorder %s106, %s108
      %p115 = scmp.eq.s32.totalorder %s30, 1
      %p116 = por %p114, %p115
      %p117 = scmp.ne.s32.totalorder %s108, %s109
      %p118 = scmp.eq.s32.totalorder %s30, 0
      %p119 = por %p117, %p118
      %p120 = scmp.ne.s32.totalorder %s108, %s109
      %p121 = scmp.eq.s32.totalorder %s31, 1
      %p122 = por %p120, %p121
      %p124 = scmp.ne.s32.totalorder %s109, %s123
      %p125 = scmp.eq.s32.totalorder %s31, 0
      %p126 = por %p124, %p125
      %s128 = sadd.s32 %s127, 1
      %p131 = scmp.eq.s32.totalorder %s25, 1
      %p132 = scmp.ne.s32.totalorder %s127, %s129
      %p133 = scmp.eq.s32.totalorder %s25, 0
      %p134 = por %p132, %p133
      %p135 = scmp.ne.s32.totalorder %s127, %s129
      %p136 = scmp.eq.s32.totalorder %s30, 1
      %p137 = por %p135, %p136
      %p138 = scmp.ne.s32.totalorder %s129, %s130
      %p139 = scmp.eq.s32.totalorder %s30, 0
      %p140 = por %p138, %p139
      %p141 = scmp.ne.s32.totalorder %s129, %s130
      %p142 = scmp.eq.s32.totalorder %s31, 1
      %p143 = por %p141, %p142
      %p145 = scmp.ne.s32.totalorder %s130, %s144
      %p146 = scmp.eq.s32.totalorder %s31, 0
      %p147 = por %p145, %p146
      %s149 = sadd.s32 %s148, 1
      %p152 = scmp.eq.s32.totalorder %s25, 1
      %p153 = scmp.ne.s32.totalorder %s148, %s150
      %p154 = scmp.eq.s32.totalorder %s25, 0
      %p155 = por %p153, %p154
      %p156 = scmp.ne.s32.totalorder %s148, %s150
      %p157 = scmp.eq.s32.totalorder %s30, 1
      %p158 = por %p156, %p157
      %p159 = scmp.ne.s32.totalorder %s150, %s151
      %p160 = scmp.eq.s32.totalorder %s30, 0
      %p161 = por %p159, %p160
      %p162 = scmp.ne.s32.totalorder %s150, %s151
      %p163 = scmp.eq.s32.totalorder %s31, 1
      %p164 = por %p162, %p163
      %p166 = scmp.ne.s32.totalorder %s151, %s165
      %p167 = scmp.eq.s32.totalorder %s31, 0
      %p168 = por %p166, %p167
      %s170 = sadd.s32 %s169, 1
      %p173 = scmp.eq.s32.totalorder %s25, 1
      %p174 = scmp.ne.s32.totalorder %s169, %s171
      %p175 = scmp.eq.s32.totalorder %s25, 0
      %p176 = por %p174, %p175
      %p177 = scmp.ne.s32.totalorder %s169, %s171
      %p178 = scmp.eq.s32.totalorder %s30, 1
      %p179 = por %p177, %p178
      %p180 = scmp.ne.s32.totalorder %s171, %s172
      %p181 = scmp.eq.s32.totalorder %s30, 0
      %p182 = por %p180, %p181
      %p183 = scmp.ne.s32.totalorder %s171, %s172
      %p184 = scmp.eq.s32.totalorder %s31, 1
      %p185 = por %p183, %p184
      %p187 = scmp.ne.s32.totalorder %s172, %s186
      %p188 = scmp.eq.s32.totalorder %s31, 0
      %p189 = por %p187, %p188
      %s191 = sadd.s32 %s190, 1
      %p194 = scmp.eq.s32.totalorder %s25, 1
      %p195 = scmp.ne.s32.totalorder %s190, %s192
      %p196 = scmp.eq.s32.totalorder %s25, 0
      %p197 = por %p195, %p196
      %p198 = scmp.ne.s32.totalorder %s190, %s192
      %p199 = scmp.eq.s32.totalorder %s30, 1
      %p200 = por %p198, %p199
      %p201 = scmp.ne.s32.totalorder %s192, %s193
      %p202 = scmp.eq.s32.totalorder %s30, 0
      %p203 = por %p201, %p202
      %p204 = scmp.ne.s32.totalorder %s192, %s193
      %p205 = scmp.eq.s32.totalorder %s31, 1
      %p206 = por %p204, %p205
      %p208 = scmp.ne.s32.totalorder %s193, %s207
      %p209 = scmp.eq.s32.totalorder %s31, 0
      %p210 = por %p208, %p209
      %s212 = sadd.s32 %s211, 1
      %p215 = scmp.eq.s32.totalorder %s25, 1
      %p216 = scmp.ne.s32.totalorder %s211, %s213
      %p217 = scmp.eq.s32.totalorder %s25, 0
      %p218 = por %p216, %p217
      %p219 = scmp.ne.s32.totalorder %s211, %s213
      %p220 = scmp.eq.s32.totalorder %s30, 1
      %p221 = por %p219, %p220
      %p222 = scmp.ne.s32.totalorder %s213, %s214
      %p223 = scmp.eq.s32.totalorder %s30, 0
      %p224 = por %p222, %p223
      %p225 = scmp.ne.s32.totalorder %s213, %s214
      %p226 = scmp.eq.s32.totalorder %s31, 1
      %p227 = por %p225, %p226
      %p229 = scmp.ne.s32.totalorder %s214, %s228
      %p230 = scmp.eq.s32.totalorder %s31, 0
      %p231 = por %p229, %p230
      %s233 = sadd.s32 %s232, 1
      %p236 = scmp.eq.s32.totalorder %s25, 1
      %p237 = scmp.ne.s32.totalorder %s232, %s234
      %p238 = scmp.eq.s32.totalorder %s25, 0
      %p239 = por %p237, %p238
      %p240 = scmp.ne.s32.totalorder %s232, %s234
      %p241 = scmp.eq.s32.totalorder %s30, 1
      %p242 = por %p240, %p241
      %p243 = scmp.ne.s32.totalorder %s234, %s235
      %p244 = scmp.eq.s32.totalorder %s30, 0
      %p245 = por %p243, %p244
      %p246 = scmp.ne.s32.totalorder %s234, %s235
      %p247 = scmp.eq.s32.totalorder %s31, 1
      %p248 = por %p246, %p247
      %p250 = scmp.ne.s32.totalorder %s235, %s249
      %p251 = scmp.eq.s32.totalorder %s31, 0
      %p252 = por %p250, %p251
      %s254 = sadd.s32 %s253, 1
      %p257 = scmp.eq.s32.totalorder %s25, 1
      %p258 = scmp.ne.s32.totalorder %s253, %s255
      %p259 = scmp.eq.s32.totalorder %s25, 0
      %p260 = por %p258, %p259
      %p261 = scmp.ne.s32.totalorder %s253, %s255
      %p262 = scmp.eq.s32.totalorder %s30, 1
      %p263 = por %p261, %p262
      %p264 = scmp.ne.s32.totalorder %s255, %s256
      %p265 = scmp.eq.s32.totalorder %s30, 0
      %p266 = por %p264, %p265
      %p267 = scmp.ne.s32.totalorder %s255, %s256
      %p268 = scmp.eq.s32.totalorder %s31, 1
      %p269 = por %p267, %p268
      %p271 = scmp.ne.s32.totalorder %s256, %s270
      %p272 = scmp.eq.s32.totalorder %s31, 0
      %p273 = por %p271, %p272
      %s275 = sadd.s32 %s274, 1
      %p278 = scmp.eq.s32.totalorder %s25, 1
      %p279 = scmp.ne.s32.totalorder %s274, %s276
      %p280 = scmp.eq.s32.totalorder %s25, 0
      %p281 = por %p279, %p280
      %p282 = scmp.ne.s32.totalorder %s274, %s276
      %p283 = scmp.eq.s32.totalorder %s30, 1
      %p284 = por %p282, %p283
      %p285 = scmp.ne.s32.totalorder %s276, %s277
      %p286 = scmp.eq.s32.totalorder %s30, 0
      %p287 = por %p285, %p286
      %p288 = scmp.ne.s32.totalorder %s276, %s277
      %p289 = scmp.eq.s32.totalorder %s31, 1
      %p290 = por %p288, %p289
      %p292 = scmp.ne.s32.totalorder %s277, %s291
      %p293 = scmp.eq.s32.totalorder %s31, 0
      %p294 = por %p292, %p293
      %s296 = sadd.s32 %s295, 1
      %p299 = scmp.eq.s32.totalorder %s25, 1
      %p300 = scmp.ne.s32.totalorder %s295, %s297
      %p301 = scmp.eq.s32.totalorder %s25, 0
      %p302 = por %p300, %p301
      %p303 = scmp.ne.s32.totalorder %s295, %s297
      %p304 = scmp.eq.s32.totalorder %s30, 1
      %p305 = por %p303, %p304
      %p306 = scmp.ne.s32.totalorder %s297, %s298
      %p307 = scmp.eq.s32.totalorder %s30, 0
      %p308 = por %p306, %p307
      %p309 = scmp.ne.s32.totalorder %s297, %s298
      %p310 = scmp.eq.s32.totalorder %s31, 1
      %p311 = por %p309, %p310
      %p313 = scmp.ne.s32.totalorder %s298, %s312
      %p314 = scmp.eq.s32.totalorder %s31, 0
      %p315 = por %p313, %p314
      %s317 = sadd.s32 %s316, 1
      %p320 = scmp.eq.s32.totalorder %s25, 1
      %p321 = scmp.ne.s32.totalorder %s316, %s318
      %p322 = scmp.eq.s32.totalorder %s25, 0
      %p323 = por %p321, %p322
      %p324 = scmp.ne.s32.totalorder %s316, %s318
      %p325 = scmp.eq.s32.totalorder %s30, 1
      %p326 = por %p324, %p325
      %p327 = scmp.ne.s32.totalorder %s318, %s319
      %p328 = scmp.eq.s32.totalorder %s30, 0
      %p329 = por %p327, %p328
      %p330 = scmp.ne.s32.totalorder %s318, %s319
      %p331 = scmp.eq.s32.totalorder %s31, 1
      %p332 = por %p330, %p331
      %p334 = scmp.ne.s32.totalorder %s319, %s333
      %p335 = scmp.eq.s32.totalorder %s31, 0
      %p336 = por %p334, %p335
      %s338 = sadd.s32 %s337, 1
      %p341 = scmp.eq.s32.totalorder %s25, 1
      %p342 = scmp.ne.s32.totalorder %s337, %s339
      %p343 = scmp.eq.s32.totalorder %s25, 0
      %p344 = por %p342, %p343
      %p345 = scmp.ne.s32.totalorder %s337, %s339
      %p346 = scmp.eq.s32.totalorder %s30, 1
      %p347 = por %p345, %p346
      %p348 = scmp.ne.s32.totalorder %s339, %s340
      %p349 = scmp.eq.s32.totalorder %s30, 0
      %p350 = por %p348, %p349
      %p351 = scmp.ne.s32.totalorder %s339, %s340
      %p352 = scmp.eq.s32.totalorder %s31, 1
      %p353 = por %p351, %p352
      %p355 = scmp.ne.s32.totalorder %s340, %s354
      %p356 = scmp.eq.s32.totalorder %s31, 0
      %p357 = por %p355, %p356
      %s359 = sadd.s32 %s358, 1
      %p362 = scmp.eq.s32.totalorder %s25, 1
      %p363 = scmp.ne.s32.totalorder %s358, %s360
      %p364 = scmp.eq.s32.totalorder %s25, 0
      %p365 = por %p363, %p364
      %p366 = scmp.ne.s32.totalorder %s358, %s360
      %p367 = scmp.eq.s32.totalorder %s30, 1
      %p368 = por %p366, %p367
      %p369 = scmp.ne.s32.totalorder %s360, %s361
      %p370 = scmp.eq.s32.totalorder %s30, 0
      %p371 = por %p369, %p370
      %p372 = scmp.ne.s32.totalorder %s360, %s361
      %p373 = scmp.eq.s32.totalorder %s31, 1
      %p374 = por %p372, %p373
      %p376 = scmp.ne.s32.totalorder %s361, %s375
      %p377 = scmp.eq.s32.totalorder %s31, 0
      %p378 = por %p376, %p377
      %s379 = ssub.s32 %s25, %s32
      %p380 = scmp.eq.s32.totalorder %s379, 0
      %s382 = sadd.s32 %s381, 1
      %s383 = scalar_select %p380, %s381, %s382
      %p386 = pneg %p380
      %p387 = scmp.eq.s32.totalorder %s25, 1
      %p388 = por %p386, %p387
      %p389 = scmp.ne.s32.totalorder %s381, %s384
      %p390 = scmp.eq.s32.totalorder %s25, 0
      %p391 = por %p389, %p390
      %p392 = scmp.ne.s32.totalorder %s381, %s384
      %p393 = scmp.eq.s32.totalorder %s30, 1
      %p394 = por %p392, %p393
      %p395 = scmp.ne.s32.totalorder %s384, %s385
      %p396 = scmp.eq.s32.totalorder %s30, 0
      %p397 = por %p395, %p396
      %p398 = scmp.ne.s32.totalorder %s384, %s385
      %p399 = scmp.eq.s32.totalorder %s31, 1
      %p400 = por %p398, %p399
      %p402 = scmp.ne.s32.totalorder %s385, %s401
      %p403 = scmp.eq.s32.totalorder %s31, 0
      %p404 = por %p402, %p403
      %p405 = scmp.le.s32.totalorder 1, %s25
      %p406 = scmp.lt.s32.totalorder %s25, 3
      %p407 = pnand %p405, %p406
      %p408 = pneg %p407
      // Predicated region
      $region9: #{decoder_forward.1} parent=5 // pred_check
        _
      $region10: #{decoder_forward.1} parent=5 // pred_check_branch
        %410 = sbr.rel (%p407) target = $region12
      $region11: #{decoder_forward.1} parent=5 // pred_region
        %s411 = ssub.s32 %s25, 1
        // Predicated region
        $region13: #{decoder_forward.1} parent=11 // pred_check
          %p412 = pneg %p98
        $region14: #{decoder_forward.1} parent=11 // pred_check_branch
          %414 = sbr.rel (%p412) target = $region16
        $region15: #{decoder_forward.1} parent=11 // pred_region
          _
        $region16: #{decoder_forward.1} parent=11 // pred_fallthru
          _
        // Predicated region
        $region17: #{decoder_forward.1} parent=11 // pred_check
          %p415 = pneg %p119
        $region18: #{decoder_forward.1} parent=11 // pred_check_branch
          %417 = sbr.rel (%p415) target = $region20
        $region19: #{decoder_forward.1} parent=11 // pred_region
          _
        $region20: #{decoder_forward.1} parent=11 // pred_fallthru
          _
        // Predicated region
        $region21: #{decoder_forward.1} parent=11 // pred_check
          %p418 = pneg %p140
        $region22: #{decoder_forward.1} parent=11 // pred_check_branch
          %420 = sbr.rel (%p418) target = $region24
        $region23: #{decoder_forward.1} parent=11 // pred_region
          _
        $region24: #{decoder_forward.1} parent=11 // pred_fallthru
          _
        // Predicated region
        $region25: #{decoder_forward.1} parent=11 // pred_check
          %p421 = pneg %p161
        $region26: #{decoder_forward.1} parent=11 // pred_check_branch
          %423 = sbr.rel (%p421) target = $region28
        $region27: #{decoder_forward.1} parent=11 // pred_region
          _
        $region28: #{decoder_forward.1} parent=11 // pred_fallthru
          _
        // Predicated region
        $region29: #{decoder_forward.1} parent=11 // pred_check
          %p424 = pneg %p182
        $region30: #{decoder_forward.1} parent=11 // pred_check_branch
          %426 = sbr.rel (%p424) target = $region32
        $region31: #{decoder_forward.1} parent=11 // pred_region
          _
        $region32: #{decoder_forward.1} parent=11 // pred_fallthru
          _
        // Predicated region
        $region33: #{decoder_forward.1} parent=11 // pred_check
          %p427 = pneg %p203
        $region34: #{decoder_forward.1} parent=11 // pred_check_branch
          %429 = sbr.rel (%p427) target = $region36
        $region35: #{decoder_forward.1} parent=11 // pred_region
          _
        $region36: #{decoder_forward.1} parent=11 // pred_fallthru
          _
        // Predicated region
        $region37: #{decoder_forward.1} parent=11 // pred_check
          %p430 = pneg %p224
        $region38: #{decoder_forward.1} parent=11 // pred_check_branch
          %432 = sbr.rel (%p430) target = $region40
        $region39: #{decoder_forward.1} parent=11 // pred_region
          _
        $region40: #{decoder_forward.1} parent=11 // pred_fallthru
          _
        // Predicated region
        $region41: #{decoder_forward.1} parent=11 // pred_check
          %p433 = pneg %p245
        $region42: #{decoder_forward.1} parent=11 // pred_check_branch
          %435 = sbr.rel (%p433) target = $region44
        $region43: #{decoder_forward.1} parent=11 // pred_region
          _
        $region44: #{decoder_forward.1} parent=11 // pred_fallthru
          _
        // Predicated region
        $region45: #{decoder_forward.1} parent=11 // pred_check
          %p436 = pneg %p266
        $region46: #{decoder_forward.1} parent=11 // pred_check_branch
          %438 = sbr.rel (%p436) target = $region48
        $region47: #{decoder_forward.1} parent=11 // pred_region
          _
        $region48: #{decoder_forward.1} parent=11 // pred_fallthru
          _
        // Predicated region
        $region49: #{decoder_forward.1} parent=11 // pred_check
          %p439 = pneg %p287
        $region50: #{decoder_forward.1} parent=11 // pred_check_branch
          %441 = sbr.rel (%p439) target = $region52
        $region51: #{decoder_forward.1} parent=11 // pred_region
          _
        $region52: #{decoder_forward.1} parent=11 // pred_fallthru
          _
        // Predicated region
        $region53: #{decoder_forward.1} parent=11 // pred_check
          %p442 = pneg %p308
        $region54: #{decoder_forward.1} parent=11 // pred_check_branch
          %444 = sbr.rel (%p442) target = $region56
        $region55: #{decoder_forward.1} parent=11 // pred_region
          _
        $region56: #{decoder_forward.1} parent=11 // pred_fallthru
          _
        // Predicated region
        $region57: #{decoder_forward.1} parent=11 // pred_check
          %p445 = pneg %p329
        $region58: #{decoder_forward.1} parent=11 // pred_check_branch
          %447 = sbr.rel (%p445) target = $region60
        $region59: #{decoder_forward.1} parent=11 // pred_region
          _
        $region60: #{decoder_forward.1} parent=11 // pred_fallthru
          _
        // Predicated region
        $region61: #{decoder_forward.1} parent=11 // pred_check
          %p448 = pneg %p350
        $region62: #{decoder_forward.1} parent=11 // pred_check_branch
          %450 = sbr.rel (%p448) target = $region64
        $region63: #{decoder_forward.1} parent=11 // pred_region
          _
        $region64: #{decoder_forward.1} parent=11 // pred_fallthru
          _
        // Predicated region
        $region65: #{decoder_forward.1} parent=11 // pred_check
          %p451 = pneg %p371
        $region66: #{decoder_forward.1} parent=11 // pred_check_branch
          %453 = sbr.rel (%p451) target = $region68
        $region67: #{decoder_forward.1} parent=11 // pred_region
          _
        $region68: #{decoder_forward.1} parent=11 // pred_fallthru
          _
      $region12: #{decoder_forward.1} parent=5 // pred_fallthru
        _
      %p454 = scmp.lt.s32.totalorder %s25, 2
      // Predicated region
      $region69: #{decoder_forward.1} parent=5 // pred_check
        %p455 = pneg %p454
      $region70: #{decoder_forward.1} parent=5 // pred_check_branch
        %457 = sbr.rel (%p455) target = $region72
      $region71: #{decoder_forward.1} parent=5 // pred_region
        // Predicated region
        $region73: #{decoder_forward.1} parent=71 // pred_check
          %p458 = pneg %p45
        $region74: #{decoder_forward.1} parent=71 // pred_check_branch
          %460 = sbr.rel (%p458) target = $region76
        $region75: #{decoder_forward.1} parent=71 // pred_region
          %p461 = scmp.lt.s32.totalorder %s25, 1
          %s462 = scalar_select %p461, %s25, 1
          %s463 = smul.addr %s462, 8
          %s464 = scalar_lea.vmem %s0, %s463
        $region76: #{decoder_forward.1} parent=71 // pred_fallthru
          _
        // Predicated region
        $region77: #{decoder_forward.1} parent=71 // pred_check
          %p465 = pneg %p71
        $region78: #{decoder_forward.1} parent=71 // pred_check_branch
          %467 = sbr.rel (%p465) target = $region80
        $region79: #{decoder_forward.1} parent=71 // pred_region
          %p468 = scmp.lt.s32.totalorder %s25, 1
          %s469 = scalar_select %p468, %s25, 1
          %s470 = smul.addr %s469, 2
          %s471 = smul.addr %s470, 8
          %s472 = scalar_lea.vmem %s1, %s471
        $region80: #{decoder_forward.1} parent=71 // pred_fallthru
          _
      $region72: #{decoder_forward.1} parent=5 // pred_fallthru
        _
      %p473 = scmp.le.s32.totalorder 1, %s25
      %p474 = scmp.lt.s32.totalorder %s25, 3
      %p475 = pnand %p473, %p474
      %p476 = pneg %p475
      // Predicated region
      $region81: #{decoder_forward.1} parent=5 // pred_check
        _
      $region82: #{decoder_forward.1} parent=5 // pred_check_branch
        %478 = sbr.rel (%p475) target = $region84
      $region83: #{decoder_forward.1} parent=5 // pred_region
        %s479 = ssub.s32 %s25, 1
        %p480 = scmp.lt.s32.totalorder %s30, 1
        %s481 = scalar_select %p480, %s30, 1
        %s482 = smul.addr %s481, 8
        %s483 = scalar_lea.vmem %s0, %s482
        %p484 = pneg %p51
        %p485 = pneg %p48
        %p486 = scmp.lt.s32.totalorder %s30, 1
        %s487 = scalar_select %p486, %s30, 1
        %s488 = smul.addr %s487, 2
        %s489 = smul.addr %s488, 8
        %s490 = scalar_lea.vmem %s1, %s489
        %p491 = pneg %p77
        %p492 = pneg %p74
        %p493 = pneg %p98
        %p494 = pneg %p95
        %p495 = pneg %p119
        %p496 = pneg %p116
        %p497 = pneg %p140
        %p498 = pneg %p137
        %p499 = pneg %p161
        %p500 = pneg %p158
        %p501 = pneg %p182
        %p502 = pneg %p179
        %p503 = pneg %p203
        %p504 = pneg %p200
        %p505 = pneg %p224
        %p506 = pneg %p221
        %p507 = pneg %p245
        %p508 = pneg %p242
        %p509 = pneg %p266
        %p510 = pneg %p263
        %p511 = pneg %p287
        %p512 = pneg %p284
        %p513 = pneg %p308
        %p514 = pneg %p305
        %p515 = pneg %p329
        %p516 = pneg %p326
        %p517 = pneg %p350
        %p518 = pneg %p347
        %p519 = pneg %p371
        %p520 = pneg %p368
        %p521 = pneg %p397
        %p522 = pneg %p394
        %s523 = sand.u32 %s384, 1
        %s524 = scalar_lea.sflag [#allocation3], %s523
        %s525 = sand.u32 %s384, 1
        %s526 = smul.addr %s525, 8
        %s527 = scalar_lea.vmem [#allocation2], %s526
        %p528 = scmp.lt.s32.totalorder %s30, 1
        %s529 = scalar_select %p528, %s30, 1
        %s530 = smul.addr %s529, 8
        %s531 = scalar_lea.vmem %s0, %s530
        %p532 = scmp.lt.s32.totalorder %s30, 1
        %s533 = scalar_select %p532, %s30, 1
        %s534 = smul.addr %s533, 2
        %s535 = smul.addr %s534, 8
        %s536 = scalar_lea.vmem %s1, %s535
        %v538 = vld [vmem:[%s531] sm:$0xff]
        %v539 = vld [vmem:[%s536] sm:$0xff]
        %v540 = vld [vmem:[%s536 + $0x8] sm:$0xf]
        %v541 = vpack.c.bf16 %v538, %v538
        %v542 = vpack.c.bf16 %v540, %v539
        %v543 = vld [vmem:[%s2] sm:$0xf]
        %v544 = vld [vmem:[%s2 + $0x4] sm:$0xf]
        %v545 = vld [vmem:[%s2 + $0x8] sm:$0xf]
        %v546 = vld [vmem:[%s2 + $0xc] sm:$0xf]
        %v547 = vld [vmem:[%s3] sm:$0x1]
        %v549 = vlaneseq
        %v550 = vshrl.u32 %v549, 7
        %v551 = vsub.s32 0, %v550
        %v552 = vrot.slane %v547, %v551
        %v558 = vunpack.c.l.b16 %v543
        %v559 = vunpack.c.l.b16 %v544
        %v560 = vunpack.c.l.b16 %v545
        %v561 = vunpack.c.l.b16 %v546
        %v562 = vpack.c.b16 %v559, %v558
        %v563 = vpack.c.b16 %v561, %v560
        %vm566 = vcmask 261120
        %v568 = vsel %vm566, %v541, 0
        %570 = vmatprep.subr.bf16.mxu0 0
        %571 = vmatpush1.bf16.msra.mxu0 %v562
        %572 = vmatprep.subr.bf16.mxu0 0
        %573 = vmatpush1.bf16.msra.mxu0 %v563
        %574 = vmatprep.subr.bf16.mxu0 0
        %575 = vmatpush1.bf16.msra.mxu0 0
        %576 = vmatprep.subr.bf16.mxu0 0
        %577 = vmatpush1.bf16.msra.mxu0 0
        %578 = vmatprep.subr.bf16.mxu0 0
        %579 = vmatpush1.bf16.msra.mxu0 0
        %580 = vmatprep.subr.bf16.mxu0 0
        %581 = vmatpush1.bf16.msra.mxu0 0
        %582 = vmatprep.subr.bf16.mxu0 0
        %583 = vmatpush1.bf16.msra.mxu0 0
        %584 = vmatprep.subr.bf16.mxu0 0
        %585 = vmatpush1.bf16.msra.mxu0 0
        %586 = vmatprep.subr.bf16.mxu0 0
        %587 = vmatpush1.bf16.msra.mxu0 0
        %588 = vmatprep.subr.bf16.mxu0 0
        %589 = vmatpush1.bf16.msra.mxu0 0
        %590 = vmatprep.subr.bf16.mxu0 0
        %591 = vmatpush1.bf16.msra.mxu0 0
        %592 = vmatprep.subr.bf16.mxu0 0
        %593 = vmatpush1.bf16.msra.mxu0 0
        %594 = vmatprep.subr.bf16.mxu0 0
        %595 = vmatpush1.bf16.msra.mxu0 0
        %596 = vmatprep.subr.bf16.mxu0 0
        %597 = vmatpush1.bf16.msra.mxu0 0
        %598 = vmatprep.subr.bf16.mxu0 0
        %599 = vmatpush1.bf16.msra.mxu0 0
        %600 = vmatprep.subr.bf16.mxu0 0
        %601 = vmatpush1.bf16.msra.mxu0 0
        %602 = vmatprep.mubr.bf16.mxu0 0
        %603 = vmatmul.mubr.bf16.gmra.mrb[0].mxu0 %v568
        %v604 = vpop.f32.mrb[0].mxu0
        %v605 = vadd.f32 %v552, %v604
        %v606 = vpop.f32.mrb[0].mxu0
        %v607 = vpop.f32.mrb[0].mxu0
        %v608 = vpop.f32.mrb[0].mxu0
        %609 = vdwg.mxu0
        %v610 = vlaneseq
        %v611 = vshrl.u32 %v610, 7
        %v612 = vlaneseq
        %v613 = vand.u32 %v612, 127
        %vm614 = vcmp.le.s32.totalorder %v613, %v611
        %v615 = vsel %vm614, 0.0, -inf
        %v616 = vpack.c.bf16 %v605, %v605
        %618 = vrot.lane.b32.xlu0 %v616, 96
        %v619 = vpop.permute.xlu0 %618
        %vm620 = vcmask 64512
        %v622 = vsel %vm620, %v616, 0
        %v625 = vsel %vm620, %v619, 0
        %627 = vmatprep.subr.bf16.mxu0 0
        %628 = vmatpush1.bf16.xpose.msra.mxu0 %v625
        %629 = vmatprep.subr.bf16.mxu0 0
        %630 = vmatpush1.bf16.xpose.msra.mxu0 0
        %631 = vmatprep.subr.bf16.mxu0 0
        %632 = vmatpush1.bf16.xpose.msra.mxu0 0
        %633 = vmatprep.subr.bf16.mxu0 0
        %634 = vmatpush1.bf16.xpose.msra.mxu0 0
        %635 = vmatprep.subr.bf16.mxu0 0
        %636 = vmatpush1.bf16.xpose.msra.mxu0 0
        %637 = vmatprep.subr.bf16.mxu0 0
        %638 = vmatpush1.bf16.xpose.msra.mxu0 0
        %639 = vmatprep.subr.bf16.mxu0 0
        %640 = vmatpush1.bf16.xpose.msra.mxu0 0
        %641 = vmatprep.subr.bf16.mxu0 0
        %642 = vmatpush1.bf16.xpose.msra.mxu0 0
        %643 = vmatprep.subr.bf16.mxu0 0
        %644 = vmatpush1.bf16.xpose.msra.mxu0 0
        %645 = vmatprep.subr.bf16.mxu0 0
        %646 = vmatpush1.bf16.xpose.msra.mxu0 0
        %647 = vmatprep.subr.bf16.mxu0 0
        %648 = vmatpush1.bf16.xpose.msra.mxu0 0
        %649 = vmatprep.subr.bf16.mxu0 0
        %650 = vmatpush1.bf16.xpose.msra.mxu0 0
        %651 = vmatprep.subr.bf16.mxu0 0
        %652 = vmatpush1.bf16.xpose.msra.mxu0 0
        %653 = vmatprep.subr.bf16.mxu0 0
        %654 = vmatpush1.bf16.xpose.msra.mxu0 0
        %655 = vmatprep.subr.bf16.mxu0 0
        %656 = vmatpush1.bf16.xpose.msra.mxu0 0
        %657 = vmatprep.subr.bf16.mxu0 0
        %658 = vmatpush1.bf16.xpose.msra.mxu0 0
        %659 = vmatprep.mubr.bf16.mxu0 0
        %660 = vmatmul.mubr.bf16.gmra.mrb[0].mxu0 %v622
        %v661 = vpop.f32.mrb[0].mxu0
        %v662 = vadd.f32 0.0, %v661
        %v663 = vpop.f32.mrb[0].mxu0
        %v664 = vpop.f32.mrb[0].mxu0
        %v665 = vpop.f32.mrb[0].mxu0
        %666 = vdwg.mxu0
        %v667 = vmul.f32 %v662, 0.35355338
        %v668 = vadd.f32 %v667, %v615
        %v669 = vsel %vm620, %v668, -inf
        %670 = vmax.xlane.f32.xlu0 %v669
        %v671 = vpop.xlane.xlu0 %670
        %v672 = vsub.f32 %v668, %v671
        %v673 = vmul.f32 %v672, 1.442695
        %v674 = vpow.pop %v673
        %v675 = vsel %vm620, %v674, 0.0
        %676 = vadd.xlane.f32.xlu0 %v675
        %v677 = vpop.xlane.xlu0 %676
        %v678 = vrcp.pop %v677
        %v679 = vmul.f32 %v674, %v678
        %v680 = vpack.c.bf16 %v679, %v679
        %681 = vrot.lane.b32.xlu0 %v616, 64
        %v682 = vpop.permute.xlu0 %681
        %v684 = vsel %vm620, %v680, 0
        %vm686 = vcmask 1043456
        %v688 = vsel %vm686, %v682, 0
        %690 = vmatprep.subr.bf16.mxu0 0
        %691 = vmatpush1.bf16.msra.mxu0 %v688
        %692 = vmatprep.subr.bf16.mxu0 0
        %693 = vmatpush1.bf16.msra.mxu0 0
        %694 = vmatprep.subr.bf16.mxu0 0
        %695 = vmatpush1.bf16.msra.mxu0 0
        %696 = vmatprep.subr.bf16.mxu0 0
        %697 = vmatpush1.bf16.msra.mxu0 0
        %698 = vmatprep.subr.bf16.mxu0 0
        %699 = vmatpush1.bf16.msra.mxu0 0
        %700 = vmatprep.subr.bf16.mxu0 0
        %701 = vmatpush1.bf16.msra.mxu0 0
        %702 = vmatprep.subr.bf16.mxu0 0
        %703 = vmatpush1.bf16.msra.mxu0 0
        %704 = vmatprep.subr.bf16.mxu0 0
        %705 = vmatpush1.bf16.msra.mxu0 0
        %706 = vmatprep.subr.bf16.mxu0 0
        %707 = vmatpush1.bf16.msra.mxu0 0
        %708 = vmatprep.subr.bf16.mxu0 0
        %709 = vmatpush1.bf16.msra.mxu0 0
        %710 = vmatprep.subr.bf16.mxu0 0
        %711 = vmatpush1.bf16.msra.mxu0 0
        %712 = vmatprep.subr.bf16.mxu0 0
        %713 = vmatpush1.bf16.msra.mxu0 0
        %714 = vmatprep.subr.bf16.mxu0 0
        %715 = vmatpush1.bf16.msra.mxu0 0
        %716 = vmatprep.subr.bf16.mxu0 0
        %717 = vmatpush1.bf16.msra.mxu0 0
        %718 = vmatprep.subr.bf16.mxu0 0
        %719 = vmatpush1.bf16.msra.mxu0 0
        %720 = vmatprep.subr.bf16.mxu0 0
        %721 = vmatpush1.bf16.msra.mxu0 0
        %722 = vmatprep.mubr.bf16.mxu0 0
        %723 = vmatmul.mubr.bf16.gmra.mrb[0].mxu0 %v684
        %v724 = vpop.f32.mrb[0].mxu0
        %v725 = vadd.f32 0.0, %v724
        %v726 = vpop.f32.mrb[0].mxu0
        %v727 = vpop.f32.mrb[0].mxu0
        %v728 = vpop.f32.mrb[0].mxu0
        %729 = vdwg.mxu0
        %730 = vrot.lane.b32.xlu0 %v616, 120
        %v731 = vpop.permute.xlu0 %730
        %732 = vrot.lane.b32.xlu0 %v616, 88
        %v733 = vpop.permute.xlu0 %732
        %v735 = vsel %vm620, %v731, 0
        %v738 = vsel %vm620, %v733, 0
        %740 = vmatprep.subr.bf16.mxu0 0
        %741 = vmatpush1.bf16.xpose.msra.mxu0 %v738
        %742 = vmatprep.subr.bf16.mxu0 0
        %743 = vmatpush1.bf16.xpose.msra.mxu0 0
        %744 = vmatprep.subr.bf16.mxu0 0
        %745 = vmatpush1.bf16.xpose.msra.mxu0 0
        %746 = vmatprep.subr.bf16.mxu0 0
        %747 = vmatpush1.bf16.xpose.msra.mxu0 0
        %748 = vmatprep.subr.bf16.mxu0 0
        %749 = vmatpush1.bf16.xpose.msra.mxu0 0
        %750 = vmatprep.subr.bf16.mxu0 0
        %751 = vmatpush1.bf16.xpose.msra.mxu0 0
        %752 = vmatprep.subr.bf16.mxu0 0
        %753 = vmatpush1.bf16.xpose.msra.mxu0 0
        %754 = vmatprep.subr.bf16.mxu0 0
        %755 = vmatpush1.bf16.xpose.msra.mxu0 0
        %756 = vmatprep.subr.bf16.mxu0 0
        %757 = vmatpush1.bf16.xpose.msra.mxu0 0
        %758 = vmatprep.subr.bf16.mxu0 0
        %759 = vmatpush1.bf16.xpose.msra.mxu0 0
        %760 = vmatprep.subr.bf16.mxu0 0
        %761 = vmatpush1.bf16.xpose.msra.mxu0 0
        %762 = vmatprep.subr.bf16.mxu0 0
        %763 = vmatpush1.bf16.xpose.msra.mxu0 0
        %764 = vmatprep.subr.bf16.mxu0 0
        %765 = vmatpush1.bf16.xpose.msra.mxu0 0
        %766 = vmatprep.subr.bf16.mxu0 0
        %767 = vmatpush1.bf16.xpose.msra.mxu0 0
        %768 = vmatprep.subr.bf16.mxu0 0
        %769 = vmatpush1.bf16.xpose.msra.mxu0 0
        %770 = vmatprep.subr.bf16.mxu0 0
        %771 = vmatpush1.bf16.xpose.msra.mxu0 0
        %772 = vmatprep.mubr.bf16.mxu0 0
        %773 = vmatmul.mubr.bf16.gmra.mrb[0].mxu0 %v735
        %v774 = vpop.f32.mrb[0].mxu0
        %v775 = vadd.f32 0.0, %v774
        %v776 = vpop.f32.mrb[0].mxu0
        %v777 = vpop.f32.mrb[0].mxu0
        %v778 = vpop.f32.mrb[0].mxu0
        %779 = vdwg.mxu0
        %v780 = vmul.f32 %v775, 0.35355338
        %v781 = vadd.f32 %v780, %v615
        %v782 = vsel %vm620, %v781, -inf
        %783 = vmax.xlane.f32.xlu0 %v782
        %v784 = vpop.xlane.xlu0 %783
        %v785 = vsub.f32 %v781, %v784
        %v786 = vmul.f32 %v785, 1.442695
        %v787 = vpow.pop %v786
        %v788 = vsel %vm620, %v787, 0.0
        %789 = vadd.xlane.f32.xlu0 %v788
        %v790 = vpop.xlane.xlu0 %789
        %v791 = vrcp.pop %v790
        %v792 = vmul.f32 %v787, %v791
        %v793 = vpack.c.bf16 %v792, %v792
        %794 = vrot.lane.b32.xlu0 %v616, 56
        %v795 = vpop.permute.xlu0 %794
        %v797 = vsel %vm620, %v793, 0
        %v800 = vsel %vm686, %v795, 0
        %802 = vmatprep.subr.bf16.mxu0 0
        %803 = vmatpush1.bf16.msra.mxu0 %v800
        %804 = vmatprep.subr.bf16.mxu0 0
        %805 = vmatpush1.bf16.msra.mxu0 0
        %806 = vmatprep.subr.bf16.mxu0 0
        %807 = vmatpush1.bf16.msra.mxu0 0
        %808 = vmatprep.subr.bf16.mxu0 0
        %809 = vmatpush1.bf16.msra.mxu0 0
        %810 = vmatprep.subr.bf16.mxu0 0
        %811 = vmatpush1.bf16.msra.mxu0 0
        %812 = vmatprep.subr.bf16.mxu0 0
        %813 = vmatpush1.bf16.msra.mxu0 0
        %814 = vmatprep.subr.bf16.mxu0 0
        %815 = vmatpush1.bf16.msra.mxu0 0
        %816 = vmatprep.subr.bf16.mxu0 0
        %817 = vmatpush1.bf16.msra.mxu0 0
        %818 = vmatprep.subr.bf16.mxu0 0
        %819 = vmatpush1.bf16.msra.mxu0 0
        %820 = vmatprep.subr.bf16.mxu0 0
        %821 = vmatpush1.bf16.msra.mxu0 0
        %822 = vmatprep.subr.bf16.mxu0 0
        %823 = vmatpush1.bf16.msra.mxu0 0
        %824 = vmatprep.subr.bf16.mxu0 0
        %825 = vmatpush1.bf16.msra.mxu0 0
        %826 = vmatprep.subr.bf16.mxu0 0
        %827 = vmatpush1.bf16.msra.mxu0 0
        %828 = vmatprep.subr.bf16.mxu0 0
        %829 = vmatpush1.bf16.msra.mxu0 0
        %830 = vmatprep.subr.bf16.mxu0 0
        %831 = vmatpush1.bf16.msra.mxu0 0
        %832 = vmatprep.subr.bf16.mxu0 0
        %833 = vmatpush1.bf16.msra.mxu0 0
        %834 = vmatprep.mubr.bf16.mxu0 0
        %835 = vmatmul.mubr.bf16.gmra.mrb[0].mxu0 %v797
        %v836 = vpop.f32.mrb[0].mxu0
        %v837 = vadd.f32 0.0, %v836
        %v838 = vpop.f32.mrb[0].mxu0
        %v839 = vpop.f32.mrb[0].mxu0
        %v840 = vpop.f32.mrb[0].mxu0
        %841 = vdwg.mxu0
        %842 = vrot.lane.b32.xlu0 %v616, 112
        %v843 = vpop.permute.xlu0 %842
        %844 = vrot.lane.b32.xlu0 %v616, 80
        %v845 = vpop.permute.xlu0 %844
        %v847 = vsel %vm620, %v843, 0
        %v850 = vsel %vm620, %v845, 0
        %852 = vmatprep.subr.bf16.mxu0 0
        %853 = vmatpush1.bf16.xpose.msra.mxu0 %v850
        %854 = vmatprep.subr.bf16.mxu0 0
        %855 = vmatpush1.bf16.xpose.msra.mxu0 0
        %856 = vmatprep.subr.bf16.mxu0 0
        %857 = vmatpush1.bf16.xpose.msra.mxu0 0
        %858 = vmatprep.subr.bf16.mxu0 0
        %859 = vmatpush1.bf16.xpose.msra.mxu0 0
        %860 = vmatprep.subr.bf16.mxu0 0
        %861 = vmatpush1.bf16.xpose.msra.mxu0 0
        %862 = vmatprep.subr.bf16.mxu0 0
        %863 = vmatpush1.bf16.xpose.msra.mxu0 0
        %864 = vmatprep.subr.bf16.mxu0 0
        %865 = vmatpush1.bf16.xpose.msra.mxu0 0
        %866 = vmatprep.subr.bf16.mxu0 0
        %867 = vmatpush1.bf16.xpose.msra.mxu0 0
        %868 = vmatprep.subr.bf16.mxu0 0
        %869 = vmatpush1.bf16.xpose.msra.mxu0 0
        %870 = vmatprep.subr.bf16.mxu0 0
        %871 = vmatpush1.bf16.xpose.msra.mxu0 0
        %872 = vmatprep.subr.bf16.mxu0 0
        %873 = vmatpush1.bf16.xpose.msra.mxu0 0
        %874 = vmatprep.subr.bf16.mxu0 0
        %875 = vmatpush1.bf16.xpose.msra.mxu0 0
        %876 = vmatprep.subr.bf16.mxu0 0
        %877 = vmatpush1.bf16.xpose.msra.mxu0 0
        %878 = vmatprep.subr.bf16.mxu0 0
        %879 = vmatpush1.bf16.xpose.msra.mxu0 0
        %880 = vmatprep.subr.bf16.mxu0 0
        %881 = vmatpush1.bf16.xpose.msra.mxu0 0
        %882 = vmatprep.subr.bf16.mxu0 0
        %883 = vmatpush1.bf16.xpose.msra.mxu0 0
        %884 = vmatprep.mubr.bf16.mxu0 0
        %885 = vmatmul.mubr.bf16.gmra.mrb[0].mxu0 %v847
        %v886 = vpop.f32.mrb[0].mxu0
        %v887 = vadd.f32 0.0, %v886
        %v888 = vpop.f32.mrb[0].mxu0
        %v889 = vpop.f32.mrb[0].mxu0
        %v890 = vpop.f32.mrb[0].mxu0
        %891 = vdwg.mxu0
        %v892 = vmul.f32 %v887, 0.35355338
        %v893 = vadd.f32 %v892, %v615
        %v894 = vsel %vm620, %v893, -inf
        %895 = vmax.xlane.f32.xlu0 %v894
        %v896 = vpop.xlane.xlu0 %895
        %v897 = vsub.f32 %v893, %v896
        %v898 = vmul.f32 %v897, 1.442695
        %v899 = vpow.pop %v898
        %v900 = vsel %vm620, %v899, 0.0
        %901 = vadd.xlane.f32.xlu0 %v900
        %v902 = vpop.xlane.xlu0 %901
        %v903 = vrcp.pop %v902
        %v904 = vmul.f32 %v899, %v903
        %v905 = vpack.c.bf16 %v904, %v904
        %906 = vrot.lane.b32.xlu0 %v616, 48
        %v907 = vpop.permute.xlu0 %906
        %v909 = vsel %vm620, %v905, 0
        %v912 = vsel %vm686, %v907, 0
        %914 = vmatprep.subr.bf16.mxu0 0
        %915 = vmatpush1.bf16.msra.mxu0 %v912
        %916 = vmatprep.subr.bf16.mxu0 0
        %917 = vmatpush1.bf16.msra.mxu0 0
        %918 = vmatprep.subr.bf16.mxu0 0
        %919 = vmatpush1.bf16.msra.mxu0 0
        %920 = vmatprep.subr.bf16.mxu0 0
        %921 = vmatpush1.bf16.msra.mxu0 0
        %922 = vmatprep.subr.bf16.mxu0 0
        %923 = vmatpush1.bf16.msra.mxu0 0
        %924 = vmatprep.subr.bf16.mxu0 0
        %925 = vmatpush1.bf16.msra.mxu0 0
        %926 = vmatprep.subr.bf16.mxu0 0
        %927 = vmatpush1.bf16.msra.mxu0 0
        %928 = vmatprep.subr.bf16.mxu0 0
        %929 = vmatpush1.bf16.msra.mxu0 0
        %930 = vmatprep.subr.bf16.mxu0 0
        %931 = vmatpush1.bf16.msra.mxu0 0
        %932 = vmatprep.subr.bf16.mxu0 0
        %933 = vmatpush1.bf16.msra.mxu0 0
        %934 = vmatprep.subr.bf16.mxu0 0
        %935 = vmatpush1.bf16.msra.mxu0 0
        %936 = vmatprep.subr.bf16.mxu0 0
        %937 = vmatpush1.bf16.msra.mxu0 0
        %938 = vmatprep.subr.bf16.mxu0 0
        %939 = vmatpush1.bf16.msra.mxu0 0
        %940 = vmatprep.subr.bf16.mxu0 0
        %941 = vmatpush1.bf16.msra.mxu0 0
        %942 = vmatprep.subr.bf16.mxu0 0
        %943 = vmatpush1.bf16.msra.mxu0 0
        %944 = vmatprep.subr.bf16.mxu0 0
        %945 = vmatpush1.bf16.msra.mxu0 0
        %946 = vmatprep.mubr.bf16.mxu0 0
        %947 = vmatmul.mubr.bf16.gmra.mrb[0].mxu0 %v909
        %v948 = vpop.f32.mrb[0].mxu0
        %v949 = vadd.f32 0.0, %v948
        %v950 = vpop.f32.mrb[0].mxu0
        %v951 = vpop.f32.mrb[0].mxu0
        %v952 = vpop.f32.mrb[0].mxu0
        %953 = vdwg.mxu0
        %954 = vrot.lane.b32.xlu0 %v616, 104
        %v955 = vpop.permute.xlu0 %954
        %956 = vrot.lane.b32.xlu0 %v616, 72
        %v957 = vpop.permute.xlu0 %956
        %v959 = vsel %vm620, %v955, 0
        %v962 = vsel %vm620, %v957, 0
        %964 = vmatprep.subr.bf16.mxu0 0
        %965 = vmatpush1.bf16.xpose.msra.mxu0 %v962
        %966 = vmatprep.subr.bf16.mxu0 0
        %967 = vmatpush1.bf16.xpose.msra.mxu0 0
        %968 = vmatprep.subr.bf16.mxu0 0
        %969 = vmatpush1.bf16.xpose.msra.mxu0 0
        %970 = vmatprep.subr.bf16.mxu0 0
        %971 = vmatpush1.bf16.xpose.msra.mxu0 0
        %972 = vmatprep.subr.bf16.mxu0 0
        %973 = vmatpush1.bf16.xpose.msra.mxu0 0
        %974 = vmatprep.subr.bf16.mxu0 0
        %975 = vmatpush1.bf16.xpose.msra.mxu0 0
        %976 = vmatprep.subr.bf16.mxu0 0
        %977 = vmatpush1.bf16.xpose.msra.mxu0 0
        %978 = vmatprep.subr.bf16.mxu0 0
        %979 = vmatpush1.bf16.xpose.msra.mxu0 0
        %980 = vmatprep.subr.bf16.mxu0 0
        %981 = vmatpush1.bf16.xpose.msra.mxu0 0
        %982 = vmatprep.subr.bf16.mxu0 0
        %983 = vmatpush1.bf16.xpose.msra.mxu0 0
        %984 = vmatprep.subr.bf16.mxu0 0
        %985 = vmatpush1.bf16.xpose.msra.mxu0 0
        %986 = vmatprep.subr.bf16.mxu0 0
        %987 = vmatpush1.bf16.xpose.msra.mxu0 0
        %988 = vmatprep.subr.bf16.mxu0 0
        %989 = vmatpush1.bf16.xpose.msra.mxu0 0
        %990 = vmatprep.subr.bf16.mxu0 0
        %991 = vmatpush1.bf16.xpose.msra.mxu0 0
        %992 = vmatprep.subr.bf16.mxu0 0
        %993 = vmatpush1.bf16.xpose.msra.mxu0 0
        %994 = vmatprep.subr.bf16.mxu0 0
        %995 = vmatpush1.bf16.xpose.msra.mxu0 0
        %996 = vmatprep.mubr.bf16.mxu0 0
        %997 = vmatmul.mubr.bf16.gmra.mrb[0].mxu0 %v959
        %v998 = vpop.f32.mrb[0].mxu0
        %v999 = vadd.f32 0.0, %v998
        %v1000 = vpop.f32.mrb[0].mxu0
        %v1001 = vpop.f32.mrb[0].mxu0
        %v1002 = vpop.f32.mrb[0].mxu0
        %1003 = vdwg.mxu0
        %v1004 = vmul.f32 %v999, 0.35355338
        %v1005 = vadd.f32 %v1004, %v615
        %v1006 = vsel %vm620, %v1005, -inf
        %1007 = vmax.xlane.f32.xlu0 %v1006
        %v1008 = vpop.xlane.xlu0 %1007
        %v1009 = vsub.f32 %v1005, %v1008
        %v1010 = vmul.f32 %v1009, 1.442695
        %v1011 = vpow.pop %v1010
        %v1012 = vsel %vm620, %v1011, 0.0
        %1013 = vadd.xlane.f32.xlu0 %v1012
        %v1014 = vpop.xlane.xlu0 %1013
        %v1015 = vrcp.pop %v1014
        %v1016 = vmul.f32 %v1011, %v1015
        %v1017 = vpack.c.bf16 %v1016, %v1016
        %1018 = vrot.lane.b32.xlu0 %v616, 40
        %v1019 = vpop.permute.xlu0 %1018
        %v1021 = vsel %vm620, %v1017, 0
        %v1024 = vsel %vm686, %v1019, 0
        %1026 = vmatprep.subr.bf16.mxu0 0
        %1027 = vmatpush1.bf16.msra.mxu0 %v1024
        %1028 = vmatprep.subr.bf16.mxu0 0
        %1029 = vmatpush1.bf16.msra.mxu0 0
        %1030 = vmatprep.subr.bf16.mxu0 0
        %1031 = vmatpush1.bf16.msra.mxu0 0
        %1032 = vmatprep.subr.bf16.mxu0 0
        %1033 = vmatpush1.bf16.msra.mxu0 0
        %1034 = vmatprep.subr.bf16.mxu0 0
        %1035 = vmatpush1.bf16.msra.mxu0 0
        %1036 = vmatprep.subr.bf16.mxu0 0
        %1037 = vmatpush1.bf16.msra.mxu0 0
        %1038 = vmatprep.subr.bf16.mxu0 0
        %1039 = vmatpush1.bf16.msra.mxu0 0
        %1040 = vmatprep.subr.bf16.mxu0 0
        %1041 = vmatpush1.bf16.msra.mxu0 0
        %1042 = vmatprep.subr.bf16.mxu0 0
        %1043 = vmatpush1.bf16.msra.mxu0 0
        %1044 = vmatprep.subr.bf16.mxu0 0
        %1045 = vmatpush1.bf16.msra.mxu0 0
        %1046 = vmatprep.subr.bf16.mxu0 0
        %1047 = vmatpush1.bf16.msra.mxu0 0
        %1048 = vmatprep.subr.bf16.mxu0 0
        %1049 = vmatpush1.bf16.msra.mxu0 0
        %1050 = vmatprep.subr.bf16.mxu0 0
        %1051 = vmatpush1.bf16.msra.mxu0 0
        %1052 = vmatprep.subr.bf16.mxu0 0
        %1053 = vmatpush1.bf16.msra.mxu0 0
        %1054 = vmatprep.subr.bf16.mxu0 0
        %1055 = vmatpush1.bf16.msra.mxu0 0
        %1056 = vmatprep.subr.bf16.mxu0 0
        %1057 = vmatpush1.bf16.msra.mxu0 0
        %1058 = vmatprep.mubr.bf16.mxu0 0
        %1059 = vmatmul.mubr.bf16.gmra.mrb[0].mxu0 %v1021
        %v1060 = vpop.f32.mrb[0].mxu0
        %v1061 = vadd.f32 0.0, %v1060
        %v1062 = vpop.f32.mrb[0].mxu0
        %v1063 = vpop.f32.mrb[0].mxu0
        %v1064 = vpop.f32.mrb[0].mxu0
        %1065 = vdwg.mxu0
        %1067 = vrot.lane.b32.xlu0 %v837, 8
        %v1068 = vpop.permute.xlu0 %1067
        %1071 = vrot.lane.b32.xlu0 %v949, 16
        %v1072 = vpop.permute.xlu0 %1071
        %1075 = vrot.lane.b32.xlu0 %v1061, 24
        %v1076 = vpop.permute.xlu0 %1075
        %v1078 = vsel %vm620, %v725, %v1068
        %vm1079 = vcmask 130048
        %v1080 = vsel %vm1079, %v1078, %v1072
        %vm1081 = vcmask 195584
        %v1082 = vsel %vm1081, %v1080, %v1076
        %v1083 = vpack.c.bf16 %v1082, %v1082
        %v1084 = vld [vmem:[%s4] sm:$0xf]
        %v1085 = vld [vmem:[%s4 + $0x4] sm:$0xf]
        %v1086 = vld [vmem:[%s4 + $0x8] sm:$0xf]
        %v1087 = vld [vmem:[%s4 + $0xc] sm:$0xf]
        %v1088 = vld [vmem:[%s5] sm:$0x1]
        %v1090 = vlaneseq
        %v1091 = vshrl.u32 %v1090, 7
        %v1092 = vsub.s32 0, %v1091
        %v1093 = vrot.slane %v1088, %v1092
        %v1099 = vunpack.c.l.b16 %v1084
        %v1100 = vunpack.c.l.b16 %v1085
        %v1101 = vunpack.c.l.b16 %v1086
        %v1102 = vunpack.c.l.b16 %v1087
        %v1103 = vpack.c.b16 %v1100, %v1099
        %v1104 = vpack.c.b16 %v1102, %v1101
        %v1108 = vsel %vm566, %v1083, 0
        %1110 = vmatprep.subr.bf16.mxu0 0
        %1111 = vmatpush1.bf16.msra.mxu0 %v1103
        %1112 = vmatprep.subr.bf16.mxu0 0
        %1113 = vmatpush1.bf16.msra.mxu0 %v1104
        %1114 = vmatprep.subr.bf16.mxu0 0
        %1115 = vmatpush1.bf16.msra.mxu0 0
        %1116 = vmatprep.subr.bf16.mxu0 0
        %1117 = vmatpush1.bf16.msra.mxu0 0
        %1118 = vmatprep.subr.bf16.mxu0 0
        %1119 = vmatpush1.bf16.msra.mxu0 0
        %1120 = vmatprep.subr.bf16.mxu0 0
        %1121 = vmatpush1.bf16.msra.mxu0 0
        %1122 = vmatprep.subr.bf16.mxu0 0
        %1123 = vmatpush1.bf16.msra.mxu0 0
        %1124 = vmatprep.subr.bf16.mxu0 0
        %1125 = vmatpush1.bf16.msra.mxu0 0
        %1126 = vmatprep.subr.bf16.mxu0 0
        %1127 = vmatpush1.bf16.msra.mxu0 0
        %1128 = vmatprep.subr.bf16.mxu0 0
        %1129 = vmatpush1.bf16.msra.mxu0 0
        %1130 = vmatprep.subr.bf16.mxu0 0
        %1131 = vmatpush1.bf16.msra.mxu0 0
        %1132 = vmatprep.subr.bf16.mxu0 0
        %1133 = vmatpush1.bf16.msra.mxu0 0
        %1134 = vmatprep.subr.bf16.mxu0 0
        %1135 = vmatpush1.bf16.msra.mxu0 0
        %1136 = vmatprep.subr.bf16.mxu0 0
        %1137 = vmatpush1.bf16.msra.mxu0 0
        %1138 = vmatprep.subr.bf16.mxu0 0
        %1139 = vmatpush1.bf16.msra.mxu0 0
        %1140 = vmatprep.subr.bf16.mxu0 0
        %1141 = vmatpush1.bf16.msra.mxu0 0
        %1142 = vmatprep.mubr.bf16.mxu0 0
        %1143 = vmatmul.mubr.bf16.gmra.mrb[0].mxu0 %v1108
        %v1144 = vpop.f32.mrb[0].mxu0
        %v1145 = vadd.f32 %v1093, %v1144
        %v1146 = vpop.f32.mrb[0].mxu0
        %v1147 = vpop.f32.mrb[0].mxu0
        %v1148 = vpop.f32.mrb[0].mxu0
        %1149 = vdwg.mxu0
        %v1150 = vadd.f32 %v1145, %v538
        %v1151 = vsel %vm566, %v1150, 0.0
        %1152 = vadd.xlane.f32.xlu0 %v1151
        %v1153 = vpop.xlane.xlu0 %1152
        %v1154 = vrcp.pop 32.0
        %v1155 = vmul.f32 %v1153, %v1154
        %v1156 = vsub.f32 %v1150, %v1155
        %v1157 = vmul.f32 %v1156, %v1156
        %v1158 = vsel %vm566, %v1157, 0.0
        %1159 = vadd.xlane.f32.xlu0 %v1158
        %v1160 = vpop.xlane.xlu0 %1159
        %v1161 = vmul.f32 %v1160, %v1154
        %v1162 = vadd.f32 %v1161, 1e-05
        %v1163 = vrsqrt.pop %v1162
        %v1164 = vmul.f32 %v1156, %v1163
        %v1165 = vld [vmem:[%s10] sm:$0x1]
        %v1167 = vlaneseq
        %v1168 = vshrl.u32 %v1167, 7
        %v1169 = vsub.s32 0, %v1168
        %v1170 = vrot.slane %v1165, %v1169
        %v1172 = vmul.f32 %v1164, %v1170
        %v1173 = vld [vmem:[%s11] sm:$0x1]
        %v1175 = vlaneseq
        %v1176 = vshrl.u32 %v1175, 7
        %v1177 = vsub.s32 0, %v1176
        %v1178 = vrot.slane %v1173, %v1177
        %v1180 = vadd.f32 %v1172, %v1178
        %v1181 = vld [vmem:[%s6] sm:$0xf]
        %v1182 = vld [vmem:[%s6 + $0x4] sm:$0xf]
        %v1183 = vld [vmem:[%s6 + $0x8] sm:$0xf]
        %v1184 = vld [vmem:[%s6 + $0xc] sm:$0xf]
        %v1185 = vld [vmem:[%s7] sm:$0x1]
        %v1187 = vlaneseq
        %v1188 = vshrl.u32 %v1187, 7
        %v1189 = vsub.s32 0, %v1188
        %v1190 = vrot.slane %v1185, %v1189
        %v1196 = vunpack.c.l.b16 %v1181
        %v1197 = vunpack.c.l.b16 %v1182
        %v1198 = vunpack.c.l.b16 %v1183
        %v1199 = vunpack.c.l.b16 %v1184
        %v1200 = vpack.c.b16 %v1197, %v1196
        %v1201 = vpack.c.b16 %v1199, %v1198
        %1204 = vmatprep.subr.bf16.mxu0 0
        %1205 = vmatpush1.bf16.msra.mxu0 %v1200
        %1206 = vmatprep.subr.bf16.mxu0 0
        %1207 = vmatpush1.bf16.msra.mxu0 %v1201
        %1208 = vmatprep.subr.bf16.mxu0 0
        %1209 = vmatpush1.bf16.msra.mxu0 0
        %1210 = vmatprep.subr.bf16.mxu0 0
        %1211 = vmatpush1.bf16.msra.mxu0 0
        %1212 = vmatprep.subr.bf16.mxu0 0
        %1213 = vmatpush1.bf16.msra.mxu0 0
        %1214 = vmatprep.subr.bf16.mxu0 0
        %1215 = vmatpush1.bf16.msra.mxu0 0
        %1216 = vmatprep.subr.bf16.mxu0 0
        %1217 = vmatpush1.bf16.msra.mxu0 0
        %1218 = vmatprep.subr.bf16.mxu0 0
        %1219 = vmatpush1.bf16.msra.mxu0 0
        %1220 = vmatprep.subr.bf16.mxu0 0
        %1221 = vmatpush1.bf16.msra.mxu0 0
        %1222 = vmatprep.subr.bf16.mxu0 0
        %1223 = vmatpush1.bf16.msra.mxu0 0
        %1224 = vmatprep.subr.bf16.mxu0 0
        %1225 = vmatpush1.bf16.msra.mxu0 0
        %1226 = vmatprep.subr.bf16.mxu0 0
        %1227 = vmatpush1.bf16.msra.mxu0 0
        %1228 = vmatprep.subr.bf16.mxu0 0
        %1229 = vmatpush1.bf16.msra.mxu0 0
        %1230 = vmatprep.subr.bf16.mxu0 0
        %1231 = vmatpush1.bf16.msra.mxu0 0
        %1232 = vmatprep.subr.bf16.mxu0 0
        %1233 = vmatpush1.bf16.msra.mxu0 0
        %1234 = vmatprep.subr.bf16.mxu0 0
        %1235 = vmatpush1.bf16.msra.mxu0 0
        %1236 = vmatprep.mubr.bf16.mxu0 0
        %1237 = vmatmul.mubr.bf16.gmra.mrb[0].mxu0 %v568
        %v1238 = vpop.f32.mrb[0].mxu0
        %v1239 = vadd.f32 %v1190, %v1238
        %v1240 = vpop.f32.mrb[0].mxu0
        %v1241 = vpop.f32.mrb[0].mxu0
        %v1242 = vpop.f32.mrb[0].mxu0
        %1243 = vdwg.mxu0
        %1244 = vrot.lane.b32.xlu0 %v1200, 96
        %v1245 = vpop.permute.xlu0 %1244
        %1246 = vrot.lane.b32.xlu0 %v1201, 96
        %v1247 = vpop.permute.xlu0 %1246
        %1250 = vrot.lane.b32.xlu0 %v1190, 96
        %v1251 = vpop.permute.xlu0 %1250
        %v1254 = vsel %vm566, %v542, 0
        %1256 = vmatprep.subr.bf16.mxu0 0
        %1257 = vmatpush1.bf16.msra.mxu0 %v1245
        %1258 = vmatprep.subr.bf16.mxu0 0
        %1259 = vmatpush1.bf16.msra.mxu0 %v1247
        %1260 = vmatprep.subr.bf16.mxu0 0
        %1261 = vmatpush1.bf16.msra.mxu0 0
        %1262 = vmatprep.subr.bf16.mxu0 0
        %1263 = vmatpush1.bf16.msra.mxu0 0
        %1264 = vmatprep.subr.bf16.mxu0 0
        %1265 = vmatpush1.bf16.msra.mxu0 0
        %1266 = vmatprep.subr.bf16.mxu0 0
        %1267 = vmatpush1.bf16.msra.mxu0 0
        %1268 = vmatprep.subr.bf16.mxu0 0
        %1269 = vmatpush1.bf16.msra.mxu0 0
        %1270 = vmatprep.subr.bf16.mxu0 0
        %1271 = vmatpush1.bf16.msra.mxu0 0
        %1272 = vmatprep.subr.bf16.mxu0 0
        %1273 = vmatpush1.bf16.msra.mxu0 0
        %1274 = vmatprep.subr.bf16.mxu0 0
        %1275 = vmatpush1.bf16.msra.mxu0 0
        %1276 = vmatprep.subr.bf16.mxu0 0
        %1277 = vmatpush1.bf16.msra.mxu0 0
        %1278 = vmatprep.subr.bf16.mxu0 0
        %1279 = vmatpush1.bf16.msra.mxu0 0
        %1280 = vmatprep.subr.bf16.mxu0 0
        %1281 = vmatpush1.bf16.msra.mxu0 0
        %1282 = vmatprep.subr.bf16.mxu0 0
        %1283 = vmatpush1.bf16.msra.mxu0 0
        %1284 = vmatprep.subr.bf16.mxu0 0
        %1285 = vmatpush1.bf16.msra.mxu0 0
        %1286 = vmatprep.subr.bf16.mxu0 0
        %1287 = vmatpush1.bf16.msra.mxu0 0
        %1288 = vmatprep.mubr.bf16.mxu0 0
        %1289 = vmatmul.mubr.bf16.gmra.mrb[0].mxu0 %v1254
        %v1290 = vpop.f32.mrb[0].mxu0
        %v1291 = vadd.f32 %v1251, %v1290
        %v1292 = vpop.f32.mrb[0].mxu0
        %v1293 = vpop.f32.mrb[0].mxu0
        %v1294 = vadd.f32 %v1251, %v1293
        %v1295 = vpop.f32.mrb[0].mxu0
        %1296 = vdwg.mxu0
        %v1297 = vpack.c.bf16 %v1239, %v1239
        %v1298 = vpack.c.bf16 %v1294, %v1291
        %v1300 = vsel %vm620, %v1297, 0
        %v1303 = vsel %vm620, %v1298, 0
        %1305 = vmatprep.subr.bf16.mxu0 0
        %1306 = vmatpush1.bf16.xpose.msra.mxu0 %v1303
        %1307 = vmatprep.subr.bf16.mxu0 0
        %1308 = vmatpush1.bf16.xpose.msra.mxu0 0
        %1309 = vmatprep.subr.bf16.mxu0 0
        %1310 = vmatpush1.bf16.xpose.msra.mxu0 0
        %1311 = vmatprep.subr.bf16.mxu0 0
        %1312 = vmatpush1.bf16.xpose.msra.mxu0 0
        %1313 = vmatprep.subr.bf16.mxu0 0
        %1314 = vmatpush1.bf16.xpose.msra.mxu0 0
        %1315 = vmatprep.subr.bf16.mxu0 0
        %1316 = vmatpush1.bf16.xpose.msra.mxu0 0
        %1317 = vmatprep.subr.bf16.mxu0 0
        %1318 = vmatpush1.bf16.xpose.msra.mxu0 0
        %1319 = vmatprep.subr.bf16.mxu0 0
        %1320 = vmatpush1.bf16.xpose.msra.mxu0 0
        %1321 = vmatprep.subr.bf16.mxu0 0
        %1322 = vmatpush1.bf16.xpose.msra.mxu0 0
        %1323 = vmatprep.subr.bf16.mxu0 0
        %1324 = vmatpush1.bf16.xpose.msra.mxu0 0
        %1325 = vmatprep.subr.bf16.mxu0 0
        %1326 = vmatpush1.bf16.xpose.msra.mxu0 0
        %1327 = vmatprep.subr.bf16.mxu0 0
        %1328 = vmatpush1.bf16.xpose.msra.mxu0 0
        %1329 = vmatprep.subr.bf16.mxu0 0
        %1330 = vmatpush1.bf16.xpose.msra.mxu0 0
        %1331 = vmatprep.subr.bf16.mxu0 0
        %1332 = vmatpush1.bf16.xpose.msra.mxu0 0
        %1333 = vmatprep.subr.bf16.mxu0 0
        %1334 = vmatpush1.bf16.xpose.msra.mxu0 0
        %1335 = vmatprep.subr.bf16.mxu0 0
        %1336 = vmatpush1.bf16.xpose.msra.mxu0 0
        %1337 = vmatprep.mubr.bf16.mxu0 0
        %1338 = vmatmul.mubr.bf16.gmra.mrb[0].mxu0 %v1300
        %v1339 = vpop.f32.mrb[0].mxu0
        %v1340 = vadd.f32 0.0, %v1339
        %v1341 = vpop.f32.mrb[0].mxu0
        %v1342 = vpop.f32.mrb[0].mxu0
        %v1343 = vpop.f32.mrb[0].mxu0
        %1344 = vdwg.mxu0
        %v1345 = vmul.f32 %v1340, 0.35355338
        %vm1346 = vcmask 97280
        %v1347 = vsel %vm1346, %v1345, -inf
        %1348 = vmax.xlane.f32.xlu0 %v1347
        %v1349 = vpop.xlane.xlu0 %1348
        %v1350 = vsub.f32 %v1345, %v1349
        %v1351 = vmul.f32 %v1350, 1.442695
        %v1352 = vpow.pop %v1351
        %v1353 = vsel %vm1346, %v1352, 0.0
        %1354 = vadd.xlane.f32.xlu0 %v1353
        %v1355 = vpop.xlane.xlu0 %1354
        %v1356 = vrcp.pop %v1355
        %v1357 = vmul.f32 %v1352, %v1356
        %v1358 = vpack.c.bf16 %v1357, %v1357
        %1360 = vrot.lane.b32.xlu0 %v1298, 96
        %v1361 = vpop.permute.xlu0 %1360
        %v1363 = vsel %vm1346, %v1358, 0
        %vm1365 = vcmask 1045504
        %v1367 = vsel %vm1365, %v1361, 0
        %1369 = vmatprep.subr.bf16.mxu0 0
        %1370 = vmatpush1.bf16.msra.mxu0 %v1367
        %1371 = vmatprep.subr.bf16.mxu0 0
        %1372 = vmatpush1.bf16.msra.mxu0 0
        %1373 = vmatprep.subr.bf16.mxu0 0
        %1374 = vmatpush1.bf16.msra.mxu0 0
        %1375 = vmatprep.subr.bf16.mxu0 0
        %1376 = vmatpush1.bf16.msra.mxu0 0
        %1377 = vmatprep.subr.bf16.mxu0 0
        %1378 = vmatpush1.bf16.msra.mxu0 0
        %1379 = vmatprep.subr.bf16.mxu0 0
        %1380 = vmatpush1.bf16.msra.mxu0 0
        %1381 = vmatprep.subr.bf16.mxu0 0
        %1382 = vmatpush1.bf16.msra.mxu0 0
        %1383 = vmatprep.subr.bf16.mxu0 0
        %1384 = vmatpush1.bf16.msra.mxu0 0
        %1385 = vmatprep.subr.bf16.mxu0 0
        %1386 = vmatpush1.bf16.msra.mxu0 0
        %1387 = vmatprep.subr.bf16.mxu0 0
        %1388 = vmatpush1.bf16.msra.mxu0 0
        %1389 = vmatprep.subr.bf16.mxu0 0
        %1390 = vmatpush1.bf16.msra.mxu0 0
        %1391 = vmatprep.subr.bf16.mxu0 0
        %1392 = vmatpush1.bf16.msra.mxu0 0
        %1393 = vmatprep.subr.bf16.mxu0 0
        %1394 = vmatpush1.bf16.msra.mxu0 0
        %1395 = vmatprep.subr.bf16.mxu0 0
        %1396 = vmatpush1.bf16.msra.mxu0 0
        %1397 = vmatprep.subr.bf16.mxu0 0
        %1398 = vmatpush1.bf16.msra.mxu0 0
        %1399 = vmatprep.subr.bf16.mxu0 0
        %1400 = vmatpush1.bf16.msra.mxu0 0
        %1401 = vmatprep.mubr.bf16.mxu0 0
        %1402 = vmatmul.mubr.bf16.gmra.mrb[0].mxu0 %v1363
        %v1403 = vpop.f32.mrb[0].mxu0
        %v1404 = vadd.f32 0.0, %v1403
        %v1405 = vpop.f32.mrb[0].mxu0
        %v1406 = vpop.f32.mrb[0].mxu0
        %v1407 = vpop.f32.mrb[0].mxu0
        %1408 = vdwg.mxu0
        %1410 = vrot.lane.b32.xlu0 %v1297, 120
        %v1411 = vpop.permute.xlu0 %1410
        %1412 = vrot.lane.b32.xlu0 %v1298, 120
        %v1413 = vpop.permute.xlu0 %1412
        %v1415 = vsel %vm620, %v1411, 0
        %v1418 = vsel %vm620, %v1413, 0
        %1420 = vmatprep.subr.bf16.mxu0 0
        %1421 = vmatpush1.bf16.xpose.msra.mxu0 %v1418
        %1422 = vmatprep.subr.bf16.mxu0 0
        %1423 = vmatpush1.bf16.xpose.msra.mxu0 0
        %1424 = vmatprep.subr.bf16.mxu0 0
        %1425 = vmatpush1.bf16.xpose.msra.mxu0 0
        %1426 = vmatprep.subr.bf16.mxu0 0
        %1427 = vmatpush1.bf16.xpose.msra.mxu0 0
        %1428 = vmatprep.subr.bf16.mxu0 0
        %1429 = vmatpush1.bf16.xpose.msra.mxu0 0
        %1430 = vmatprep.subr.bf16.mxu0 0
        %1431 = vmatpush1.bf16.xpose.msra.mxu0 0
        %1432 = vmatprep.subr.bf16.mxu0 0
        %1433 = vmatpush1.bf16.xpose.msra.mxu0 0
        %1434 = vmatprep.subr.bf16.mxu0 0
        %1435 = vmatpush1.bf16.xpose.msra.mxu0 0
        %1436 = vmatprep.subr.bf16.mxu0 0
        %1437 = vmatpush1.bf16.xpose.msra.mxu0 0
        %1438 = vmatprep.subr.bf16.mxu0 0
        %1439 = vmatpush1.bf16.xpose.msra.mxu0 0
        %1440 = vmatprep.subr.bf16.mxu0 0
        %1441 = vmatpush1.bf16.xpose.msra.mxu0 0
        %1442 = vmatprep.subr.bf16.mxu0 0
        %1443 = vmatpush1.bf16.xpose.msra.mxu0 0
        %1444 = vmatprep.subr.bf16.mxu0 0
        %1445 = vmatpush1.bf16.xpose.msra.mxu0 0
        %1446 = vmatprep.subr.bf16.mxu0 0
        %1447 = vmatpush1.bf16.xpose.msra.mxu0 0
        %1448 = vmatprep.subr.bf16.mxu0 0
        %1449 = vmatpush1.bf16.xpose.msra.mxu0 0
        %1450 = vmatprep.subr.bf16.mxu0 0
        %1451 = vmatpush1.bf16.xpose.msra.mxu0 0
        %1452 = vmatprep.mubr.bf16.mxu0 0
        %1453 = vmatmul.mubr.bf16.gmra.mrb[0].mxu0 %v1415
        %v1454 = vpop.f32.mrb[0].mxu0
        %v1455 = vadd.f32 0.0, %v1454
        %v1456 = vpop.f32.mrb[0].mxu0
        %v1457 = vpop.f32.mrb[0].mxu0
        %v1458 = vpop.f32.mrb[0].mxu0
        %1459 = vdwg.mxu0
        %v1460 = vmul.f32 %v1455, 0.35355338
        %v1461 = vsel %vm1346, %v1460, -inf
        %1462 = vmax.xlane.f32.xlu0 %v1461
        %v1463 = vpop.xlane.xlu0 %1462
        %v1464 = vsub.f32 %v1460, %v1463
        %v1465 = vmul.f32 %v1464, 1.442695
        %v1466 = vpow.pop %v1465
        %v1467 = vsel %vm1346, %v1466, 0.0
        %1468 = vadd.xlane.f32.xlu0 %v1467
        %v1469 = vpop.xlane.xlu0 %1468
        %v1470 = vrcp.pop %v1469
        %v1471 = vmul.f32 %v1466, %v1470
        %v1472 = vpack.c.bf16 %v1471, %v1471
        %1473 = vrot.lane.b32.xlu0 %v1298, 88
        %v1474 = vpop.permute.xlu0 %1473
        %v1476 = vsel %vm1346, %v1472, 0
        %v1479 = vsel %vm1365, %v1474, 0
        %1481 = vmatprep.subr.bf16.mxu0 0
        %1482 = vmatpush1.bf16.msra.mxu0 %v1479
        %1483 = vmatprep.subr.bf16.mxu0 0
        %1484 = vmatpush1.bf16.msra.mxu0 0
        %1485 = vmatprep.subr.bf16.mxu0 0
        %1486 = vmatpush1.bf16.msra.mxu0 0
        %1487 = vmatprep.subr.bf16.mxu0 0
        %1488 = vmatpush1.bf16.msra.mxu0 0
        %1489 = vmatprep.subr.bf16.mxu0 0
        %1490 = vmatpush1.bf16.msra.mxu0 0
        %1491 = vmatprep.subr.bf16.mxu0 0
        %1492 = vmatpush1.bf16.msra.mxu0 0
        %1493 = vmatprep.subr.bf16.mxu0 0
        %1494 = vmatpush1.bf16.msra.mxu0 0
        %1495 = vmatprep.subr.bf16.mxu0 0
        %1496 = vmatpush1.bf16.msra.mxu0 0
        %1497 = vmatprep.subr.bf16.mxu0 0
        %1498 = vmatpush1.bf16.msra.mxu0 0
        %1499 = vmatprep.subr.bf16.mxu0 0
        %1500 = vmatpush1.bf16.msra.mxu0 0
        %1501 = vmatprep.subr.bf16.mxu0 0
        %1502 = vmatpush1.bf16.msra.mxu0 0
        %1503 = vmatprep.subr.bf16.mxu0 0
        %1504 = vmatpush1.bf16.msra.mxu0 0
        %1505 = vmatprep.subr.bf16.mxu0 0
        %1506 = vmatpush1.bf16.msra.mxu0 0
        %1507 = vmatprep.subr.bf16.mxu0 0
        %1508 = vmatpush1.bf16.msra.mxu0 0
        %1509 = vmatprep.subr.bf16.mxu0 0
        %1510 = vmatpush1.bf16.msra.mxu0 0
        %1511 = vmatprep.subr.bf16.mxu0 0
        %1512 = vmatpush1.bf16.msra.mxu0 0
        %1513 = vmatprep.mubr.bf16.mxu0 0
        %1514 = vmatmul.mubr.bf16.gmra.mrb[0].mxu0 %v1476
        %v1515 = vpop.f32.mrb[0].mxu0
        %v1516 = vadd.f32 0.0, %v1515
        %v1517 = vpop.f32.mrb[0].mxu0
        %v1518 = vpop.f32.mrb[0].mxu0
        %v1519 = vpop.f32.mrb[0].mxu0
        %1520 = vdwg.mxu0
        %1521 = vrot.lane.b32.xlu0 %v1297, 112
        %v1522 = vpop.permute.xlu0 %1521
        %1523 = vrot.lane.b32.xlu0 %v1298, 112
        %v1524 = vpop.permute.xlu0 %1523
        %v1526 = vsel %vm620, %v1522, 0
        %v1529 = vsel %vm620, %v1524, 0
        %1531 = vmatprep.subr.bf16.mxu0 0
        %1532 = vmatpush1.bf16.xpose.msra.mxu0 %v1529
        %1533 = vmatprep.subr.bf16.mxu0 0
        %1534 = vmatpush1.bf16.xpose.msra.mxu0 0
        %1535 = vmatprep.subr.bf16.mxu0 0
        %1536 = vmatpush1.bf16.xpose.msra.mxu0 0
        %1537 = vmatprep.subr.bf16.mxu0 0
        %1538 = vmatpush1.bf16.xpose.msra.mxu0 0
        %1539 = vmatprep.subr.bf16.mxu0 0
        %1540 = vmatpush1.bf16.xpose.msra.mxu0 0
        %1541 = vmatprep.subr.bf16.mxu0 0
        %1542 = vmatpush1.bf16.xpose.msra.mxu0 0
        %1543 = vmatprep.subr.bf16.mxu0 0
        %1544 = vmatpush1.bf16.xpose.msra.mxu0 0
        %1545 = vmatprep.subr.bf16.mxu0 0
        %1546 = vmatpush1.bf16.xpose.msra.mxu0 0
        %1547 = vmatprep.subr.bf16.mxu0 0
        %1548 = vmatpush1.bf16.xpose.msra.mxu0 0
        %1549 = vmatprep.subr.bf16.mxu0 0
        %1550 = vmatpush1.bf16.xpose.msra.mxu0 0
        %1551 = vmatprep.subr.bf16.mxu0 0
        %1552 = vmatpush1.bf16.xpose.msra.mxu0 0
        %1553 = vmatprep.subr.bf16.mxu0 0
        %1554 = vmatpush1.bf16.xpose.msra.mxu0 0
        %1555 = vmatprep.subr.bf16.mxu0 0
        %1556 = vmatpush1.bf16.xpose.msra.mxu0 0
        %1557 = vmatprep.subr.bf16.mxu0 0
        %1558 = vmatpush1.bf16.xpose.msra.mxu0 0
        %1559 = vmatprep.subr.bf16.mxu0 0
        %1560 = vmatpush1.bf16.xpose.msra.mxu0 0
        %1561 = vmatprep.subr.bf16.mxu0 0
        %1562 = vmatpush1.bf16.xpose.msra.mxu0 0
        %1563 = vmatprep.mubr.bf16.mxu0 0
        %1564 = vmatmul.mubr.bf16.gmra.mrb[0].mxu0 %v1526
        %v1565 = vpop.f32.mrb[0].mxu0
        %v1566 = vadd.f32 0.0, %v1565
        %v1567 = vpop.f32.mrb[0].mxu0
        %v1568 = vpop.f32.mrb[0].mxu0
        %v1569 = vpop.f32.mrb[0].mxu0
        %1570 = vdwg.mxu0
        %v1571 = vmul.f32 %v1566, 0.35355338
        %v1572 = vsel %vm1346, %v1571, -inf
        %1573 = vmax.xlane.f32.xlu0 %v1572
        %v1574 = vpop.xlane.xlu0 %1573
        %v1575 = vsub.f32 %v1571, %v1574
        %v1576 = vmul.f32 %v1575, 1.442695
        %v1577 = vpow.pop %v1576
        %v1578 = vsel %vm1346, %v1577, 0.0
        %1579 = vadd.xlane.f32.xlu0 %v1578
        %v1580 = vpop.xlane.xlu0 %1579
        %v1581 = vrcp.pop %v1580
        %v1582 = vmul.f32 %v1577, %v1581
        %v1583 = vpack.c.bf16 %v1582, %v1582
        %1584 = vrot.lane.b32.xlu0 %v1298, 80
        %v1585 = vpop.permute.xlu0 %1584
        %v1587 = vsel %vm1346, %v1583, 0
        %v1590 = vsel %vm1365, %v1585, 0
        %1592 = vmatprep.subr.bf16.mxu0 0
        %1593 = vmatpush1.bf16.msra.mxu0 %v1590
        %1594 = vmatprep.subr.bf16.mxu0 0
        %1595 = vmatpush1.bf16.msra.mxu0 0
        %1596 = vmatprep.subr.bf16.mxu0 0
        %1597 = vmatpush1.bf16.msra.mxu0 0
        %1598 = vmatprep.subr.bf16.mxu0 0
        %1599 = vmatpush1.bf16.msra.mxu0 0
        %1600 = vmatprep.subr.bf16.mxu0 0
        %1601 = vmatpush1.bf16.msra.mxu0 0
        %1602 = vmatprep.subr.bf16.mxu0 0
        %1603 = vmatpush1.bf16.msra.mxu0 0
        %1604 = vmatprep.subr.bf16.mxu0 0
        %1605 = vmatpush1.bf16.msra.mxu0 0
        %1606 = vmatprep.subr.bf16.mxu0 0
        %1607 = vmatpush1.bf16.msra.mxu0 0
        %1608 = vmatprep.subr.bf16.mxu0 0
        %1609 = vmatpush1.bf16.msra.mxu0 0
        %1610 = vmatprep.subr.bf16.mxu0 0
        %1611 = vmatpush1.bf16.msra.mxu0 0
        %1612 = vmatprep.subr.bf16.mxu0 0
        %1613 = vmatpush1.bf16.msra.mxu0 0
        %1614 = vmatprep.subr.bf16.mxu0 0
        %1615 = vmatpush1.bf16.msra.mxu0 0
        %1616 = vmatprep.subr.bf16.mxu0 0
        %1617 = vmatpush1.bf16.msra.mxu0 0
        %1618 = vmatprep.subr.bf16.mxu0 0
        %1619 = vmatpush1.bf16.msra.mxu0 0
        %1620 = vmatprep.subr.bf16.mxu0 0
        %1621 = vmatpush1.bf16.msra.mxu0 0
        %1622 = vmatprep.subr.bf16.mxu0 0
        %1623 = vmatpush1.bf16.msra.mxu0 0
        %1624 = vmatprep.mubr.bf16.mxu0 0
        %1625 = vmatmul.mubr.bf16.gmra.mrb[0].mxu0 %v1587
        %v1626 = vpop.f32.mrb[0].mxu0
        %v1627 = vadd.f32 0.0, %v1626
        %v1628 = vpop.f32.mrb[0].mxu0
        %v1629 = vpop.f32.mrb[0].mxu0
        %v1630 = vpop.f32.mrb[0].mxu0
        %1631 = vdwg.mxu0
        %1632 = vrot.lane.b32.xlu0 %v1297, 104
        %v1633 = vpop.permute.xlu0 %1632
        %1634 = vrot.lane.b32.xlu0 %v1298, 104
        %v1635 = vpop.permute.xlu0 %1634
        %v1637 = vsel %vm620, %v1633, 0
        %v1640 = vsel %vm620, %v1635, 0
        %1642 = vmatprep.subr.bf16.mxu0 0
        %1643 = vmatpush1.bf16.xpose.msra.mxu0 %v1640
        %1644 = vmatprep.subr.bf16.mxu0 0
        %1645 = vmatpush1.bf16.xpose.msra.mxu0 0
        %1646 = vmatprep.subr.bf16.mxu0 0
        %1647 = vmatpush1.bf16.xpose.msra.mxu0 0
        %1648 = vmatprep.subr.bf16.mxu0 0
        %1649 = vmatpush1.bf16.xpose.msra.mxu0 0
        %1650 = vmatprep.subr.bf16.mxu0 0
        %1651 = vmatpush1.bf16.xpose.msra.mxu0 0
        %1652 = vmatprep.subr.bf16.mxu0 0
        %1653 = vmatpush1.bf16.xpose.msra.mxu0 0
        %1654 = vmatprep.subr.bf16.mxu0 0
        %1655 = vmatpush1.bf16.xpose.msra.mxu0 0
        %1656 = vmatprep.subr.bf16.mxu0 0
        %1657 = vmatpush1.bf16.xpose.msra.mxu0 0
        %1658 = vmatprep.subr.bf16.mxu0 0
        %1659 = vmatpush1.bf16.xpose.msra.mxu0 0
        %1660 = vmatprep.subr.bf16.mxu0 0
        %1661 = vmatpush1.bf16.xpose.msra.mxu0 0
        %1662 = vmatprep.subr.bf16.mxu0 0
        %1663 = vmatpush1.bf16.xpose.msra.mxu0 0
        %1664 = vmatprep.subr.bf16.mxu0 0
        %1665 = vmatpush1.bf16.xpose.msra.mxu0 0
        %1666 = vmatprep.subr.bf16.mxu0 0
        %1667 = vmatpush1.bf16.xpose.msra.mxu0 0
        %1668 = vmatprep.subr.bf16.mxu0 0
        %1669 = vmatpush1.bf16.xpose.msra.mxu0 0
        %1670 = vmatprep.subr.bf16.mxu0 0
        %1671 = vmatpush1.bf16.xpose.msra.mxu0 0
        %1672 = vmatprep.subr.bf16.mxu0 0
        %1673 = vmatpush1.bf16.xpose.msra.mxu0 0
        %1674 = vmatprep.mubr.bf16.mxu0 0
        %1675 = vmatmul.mubr.bf16.gmra.mrb[0].mxu0 %v1637
        %v1676 = vpop.f32.mrb[0].mxu0
        %v1677 = vadd.f32 0.0, %v1676
        %v1678 = vpop.f32.mrb[0].mxu0
        %v1679 = vpop.f32.mrb[0].mxu0
        %v1680 = vpop.f32.mrb[0].mxu0
        %1681 = vdwg.mxu0
        %v1682 = vmul.f32 %v1677, 0.35355338
        %v1683 = vsel %vm1346, %v1682, -inf
        %1684 = vmax.xlane.f32.xlu0 %v1683
        %v1685 = vpop.xlane.xlu0 %1684
        %v1686 = vsub.f32 %v1682, %v1685
        %v1687 = vmul.f32 %v1686, 1.442695
        %v1688 = vpow.pop %v1687
        %v1689 = vsel %vm1346, %v1688, 0.0
        %1690 = vadd.xlane.f32.xlu0 %v1689
        %v1691 = vpop.xlane.xlu0 %1690
        %v1692 = vrcp.pop %v1691
        %v1693 = vmul.f32 %v1688, %v1692
        %v1694 = vpack.c.bf16 %v1693, %v1693
        %1695 = vrot.lane.b32.xlu0 %v1298, 72
        %v1696 = vpop.permute.xlu0 %1695
        %v1698 = vsel %vm1346, %v1694, 0
        %v1701 = vsel %vm1365, %v1696, 0
        %1703 = vmatprep.subr.bf16.mxu0 0
        %1704 = vmatpush1.bf16.msra.mxu0 %v1701
        %1705 = vmatprep.subr.bf16.mxu0 0
        %1706 = vmatpush1.bf16.msra.mxu0 0
        %1707 = vmatprep.subr.bf16.mxu0 0
        %1708 = vmatpush1.bf16.msra.mxu0 0
        %1709 = vmatprep.subr.bf16.mxu0 0
        %1710 = vmatpush1.bf16.msra.mxu0 0
        %1711 = vmatprep.subr.bf16.mxu0 0
        %1712 = vmatpush1.bf16.msra.mxu0 0
        %1713 = vmatprep.subr.bf16.mxu0 0
        %1714 = vmatpush1.bf16.msra.mxu0 0
        %1715 = vmatprep.subr.bf16.mxu0 0
        %1716 = vmatpush1.bf16.msra.mxu0 0
        %1717 = vmatprep.subr.bf16.mxu0 0
        %1718 = vmatpush1.bf16.msra.mxu0 0
        %1719 = vmatprep.subr.bf16.mxu0 0
        %1720 = vmatpush1.bf16.msra.mxu0 0
        %1721 = vmatprep.subr.bf16.mxu0 0
        %1722 = vmatpush1.bf16.msra.mxu0 0
        %1723 = vmatprep.subr.bf16.mxu0 0
        %1724 = vmatpush1.bf16.msra.mxu0 0
        %1725 = vmatprep.subr.bf16.mxu0 0
        %1726 = vmatpush1.bf16.msra.mxu0 0
        %1727 = vmatprep.subr.bf16.mxu0 0
        %1728 = vmatpush1.bf16.msra.mxu0 0
        %1729 = vmatprep.subr.bf16.mxu0 0
        %1730 = vmatpush1.bf16.msra.mxu0 0
        %1731 = vmatprep.subr.bf16.mxu0 0
        %1732 = vmatpush1.bf16.msra.mxu0 0
        %1733 = vmatprep.subr.bf16.mxu0 0
        %1734 = vmatpush1.bf16.msra.mxu0 0
        %1735 = vmatprep.mubr.bf16.mxu0 0
        %1736 = vmatmul.mubr.bf16.gmra.mrb[0].mxu0 %v1698
        %v1737 = vpop.f32.mrb[0].mxu0
        %v1738 = vadd.f32 0.0, %v1737
        %v1739 = vpop.f32.mrb[0].mxu0
        %v1740 = vpop.f32.mrb[0].mxu0
        %v1741 = vpop.f32.mrb[0].mxu0
        %1742 = vdwg.mxu0
        %1744 = vrot.lane.b32.xlu0 %v1516, 8
        %v1745 = vpop.permute.xlu0 %1744
        %1748 = vrot.lane.b32.xlu0 %v1627, 16
        %v1749 = vpop.permute.xlu0 %1748
        %1752 = vrot.lane.b32.xlu0 %v1738, 24
        %v1753 = vpop.permute.xlu0 %1752
        %v1755 = vsel %vm620, %v1404, %v1745
        %v1756 = vsel %vm1079, %v1755, %v1749
        %v1757 = vsel %vm1081, %v1756, %v1753
        %v1758 = vpack.c.bf16 %v1757, %v1757
        %v1759 = vld [vmem:[%s8] sm:$0xf]
        %v1760 = vld [vmem:[%s8 + $0x4] sm:$0xf]
        %v1761 = vld [vmem:[%s8 + $0x8] sm:$0xf]
        %v1762 = vld [vmem:[%s8 + $0xc] sm:$0xf]
        %v1763 = vld [vmem:[%s9] sm:$0x1]
        %v1765 = vlaneseq
        %v1766 = vshrl.u32 %v1765, 7
        %v1767 = vsub.s32 0, %v1766
        %v1768 = vrot.slane %v1763, %v1767
        %v1774 = vunpack.c.l.b16 %v1759
        %v1775 = vunpack.c.l.b16 %v1760
        %v1776 = vunpack.c.l.b16 %v1761
        %v1777 = vunpack.c.l.b16 %v1762
        %v1778 = vpack.c.b16 %v1775, %v1774
        %v1779 = vpack.c.b16 %v1777, %v1776
        %v1783 = vsel %vm566, %v1758, 0
        %1785 = vmatprep.subr.bf16.mxu0 0
        %1786 = vmatpush1.bf16.msra.mxu0 %v1778
        %1787 = vmatprep.subr.bf16.mxu0 0
        %1788 = vmatpush1.bf16.msra.mxu0 %v1779
        %1789 = vmatprep.subr.bf16.mxu0 0
        %1790 = vmatpush1.bf16.msra.mxu0 0
        %1791 = vmatprep.subr.bf16.mxu0 0
        %1792 = vmatpush1.bf16.msra.mxu0 0
        %1793 = vmatprep.subr.bf16.mxu0 0
        %1794 = vmatpush1.bf16.msra.mxu0 0
        %1795 = vmatprep.subr.bf16.mxu0 0
        %1796 = vmatpush1.bf16.msra.mxu0 0
        %1797 = vmatprep.subr.bf16.mxu0 0
        %1798 = vmatpush1.bf16.msra.mxu0 0
        %1799 = vmatprep.subr.bf16.mxu0 0
        %1800 = vmatpush1.bf16.msra.mxu0 0
        %1801 = vmatprep.subr.bf16.mxu0 0
        %1802 = vmatpush1.bf16.msra.mxu0 0
        %1803 = vmatprep.subr.bf16.mxu0 0
        %1804 = vmatpush1.bf16.msra.mxu0 0
        %1805 = vmatprep.subr.bf16.mxu0 0
        %1806 = vmatpush1.bf16.msra.mxu0 0
        %1807 = vmatprep.subr.bf16.mxu0 0
        %1808 = vmatpush1.bf16.msra.mxu0 0
        %1809 = vmatprep.subr.bf16.mxu0 0
        %1810 = vmatpush1.bf16.msra.mxu0 0
        %1811 = vmatprep.subr.bf16.mxu0 0
        %1812 = vmatpush1.bf16.msra.mxu0 0
        %1813 = vmatprep.subr.bf16.mxu0 0
        %1814 = vmatpush1.bf16.msra.mxu0 0
        %1815 = vmatprep.subr.bf16.mxu0 0
        %1816 = vmatpush1.bf16.msra.mxu0 0
        %1817 = vmatprep.mubr.bf16.mxu0 0
        %1818 = vmatmul.mubr.bf16.gmra.mrb[0].mxu0 %v1783
        %v1819 = vpop.f32.mrb[0].mxu0
        %v1820 = vadd.f32 %v1768, %v1819
        %v1821 = vpop.f32.mrb[0].mxu0
        %v1822 = vpop.f32.mrb[0].mxu0
        %v1823 = vpop.f32.mrb[0].mxu0
        %1824 = vdwg.mxu0
        %v1825 = vadd.f32 %v1820, %v1180
        %v1826 = vsel %vm566, %v1825, 0.0
        %1827 = vadd.xlane.f32.xlu0 %v1826
        %v1828 = vpop.xlane.xlu0 %1827
        %v1829 = vmul.f32 %v1828, %v1154
        %v1830 = vsub.f32 %v1825, %v1829
        %v1831 = vmul.f32 %v1830, %v1830
        %v1832 = vsel %vm566, %v1831, 0.0
        %1833 = vadd.xlane.f32.xlu0 %v1832
        %v1834 = vpop.xlane.xlu0 %1833
        %v1835 = vmul.f32 %v1834, %v1154
        %v1836 = vadd.f32 %v1835, 1e-05
        %v1837 = vrsqrt.pop %v1836
        %v1838 = vmul.f32 %v1830, %v1837
        %v1839 = vmul.f32 %v1838, %v1170
        %v1840 = vadd.f32 %v1839, %v1178
        %v1841 = vpack.c.bf16 %v1840, %v1840
        %v1842 = vld [vmem:[%s12] sm:$0xf]
        %v1843 = vld [vmem:[%s12 + $0x4] sm:$0xf]
        %v1844 = vld [vmem:[%s12 + $0x8] sm:$0xf]
        %v1845 = vld [vmem:[%s12 + $0xc] sm:$0xf]
        %v1846 = vld [vmem:[%s13] sm:$0x1]
        %v1848 = vlaneseq
        %v1849 = vshrl.u32 %v1848, 7
        %v1850 = vsub.s32 0, %v1849
        %v1851 = vrot.slane %v1846, %v1850
        %v1857 = vunpack.c.l.b16 %v1842
        %v1858 = vunpack.c.l.b16 %v1843
        %v1859 = vunpack.c.l.b16 %v1844
        %v1860 = vunpack.c.l.b16 %v1845
        %v1861 = vpack.c.b16 %v1858, %v1857
        %v1862 = vpack.c.b16 %v1860, %v1859
        %v1866 = vsel %vm566, %v1841, 0
        %1868 = vmatprep.subr.bf16.mxu0 0
        %1869 = vmatpush1.bf16.msra.mxu0 %v1861
        %1870 = vmatprep.subr.bf16.mxu0 0
        %1871 = vmatpush1.bf16.msra.mxu0 %v1862
        %1872 = vmatprep.subr.bf16.mxu0 0
        %1873 = vmatpush1.bf16.msra.mxu0 0
        %1874 = vmatprep.subr.bf16.mxu0 0
        %1875 = vmatpush1.bf16.msra.mxu0 0
        %1876 = vmatprep.subr.bf16.mxu0 0
        %1877 = vmatpush1.bf16.msra.mxu0 0
        %1878 = vmatprep.subr.bf16.mxu0 0
        %1879 = vmatpush1.bf16.msra.mxu0 0
        %1880 = vmatprep.subr.bf16.mxu0 0
        %1881 = vmatpush1.bf16.msra.mxu0 0
        %1882 = vmatprep.subr.bf16.mxu0 0
        %1883 = vmatpush1.bf16.msra.mxu0 0
        %1884 = vmatprep.subr.bf16.mxu0 0
        %1885 = vmatpush1.bf16.msra.mxu0 0
        %1886 = vmatprep.subr.bf16.mxu0 0
        %1887 = vmatpush1.bf16.msra.mxu0 0
        %1888 = vmatprep.subr.bf16.mxu0 0
        %1889 = vmatpush1.bf16.msra.mxu0 0
        %1890 = vmatprep.subr.bf16.mxu0 0
        %1891 = vmatpush1.bf16.msra.mxu0 0
        %1892 = vmatprep.subr.bf16.mxu0 0
        %1893 = vmatpush1.bf16.msra.mxu0 0
        %1894 = vmatprep.subr.bf16.mxu0 0
        %1895 = vmatpush1.bf16.msra.mxu0 0
        %1896 = vmatprep.subr.bf16.mxu0 0
        %1897 = vmatpush1.bf16.msra.mxu0 0
        %1898 = vmatprep.subr.bf16.mxu0 0
        %1899 = vmatpush1.bf16.msra.mxu0 0
        %1900 = vmatprep.mubr.bf16.mxu0 0
        %1901 = vmatmul.mubr.bf16.gmra.mrb[0].mxu0 %v1866
        %v1902 = vpop.f32.mrb[0].mxu0
        %v1903 = vadd.f32 %v1851, %v1902
        %v1904 = vpop.f32.mrb[0].mxu0
        %v1905 = vpop.f32.mrb[0].mxu0
        %v1906 = vpop.f32.mrb[0].mxu0
        %1907 = vdwg.mxu0
        %v1908 = vmax.f32 %v1903, 0.0
        %v1909 = vpack.c.bf16 %v1908, %v1908
        %v1910 = vld [vmem:[%s14] sm:$0xf]
        %v1911 = vld [vmem:[%s14 + $0x4] sm:$0xf]
        %v1912 = vld [vmem:[%s14 + $0x8] sm:$0xf]
        %v1913 = vld [vmem:[%s14 + $0xc] sm:$0xf]
        %v1914 = vld [vmem:[%s14 + $0x10] sm:$0xf]
        %v1915 = vld [vmem:[%s14 + $0x14] sm:$0xf]
        %v1916 = vld [vmem:[%s14 + $0x18] sm:$0xf]
        %v1917 = vld [vmem:[%s14 + $0x1c] sm:$0xf]
        %v1918 = vld [vmem:[%s15] sm:$0x1]
        %v1920 = vlaneseq
        %v1921 = vshrl.u32 %v1920, 7
        %v1922 = vsub.s32 0, %v1921
        %v1923 = vrot.slane %v1918, %v1922
        %v1933 = vunpack.c.l.b16 %v1910
        %v1934 = vunpack.c.l.b16 %v1911
        %v1935 = vunpack.c.l.b16 %v1912
        %v1936 = vunpack.c.l.b16 %v1913
        %v1937 = vunpack.c.l.b16 %v1914
        %v1938 = vunpack.c.l.b16 %v1915
        %v1939 = vunpack.c.l.b16 %v1916
        %v1940 = vunpack.c.l.b16 %v1917
        %v1941 = vpack.c.b16 %v1934, %v1933
        %v1942 = vpack.c.b16 %v1936, %v1935
        %v1943 = vpack.c.b16 %v1938, %v1937
        %v1944 = vpack.c.b16 %v1940, %v1939
        %vm1949 = vcmask 523264
        %v1951 = vsel %vm1949, %v1909, 0
        %1953 = vmatprep.subr.bf16.mxu0 0
        %1954 = vmatpush1.bf16.msra.mxu0 %v1941
        %1955 = vmatprep.subr.bf16.mxu0 0
        %1956 = vmatpush1.bf16.msra.mxu0 %v1942
        %1957 = vmatprep.subr.bf16.mxu0 0
        %1958 = vmatpush1.bf16.msra.mxu0 %v1943
        %1959 = vmatprep.subr.bf16.mxu0 0
        %1960 = vmatpush1.bf16.msra.mxu0 %v1944
        %1961 = vmatprep.subr.bf16.mxu0 0
        %1962 = vmatpush1.bf16.msra.mxu0 0
        %1963 = vmatprep.subr.bf16.mxu0 0
        %1964 = vmatpush1.bf16.msra.mxu0 0
        %1965 = vmatprep.subr.bf16.mxu0 0
        %1966 = vmatpush1.bf16.msra.mxu0 0
        %1967 = vmatprep.subr.bf16.mxu0 0
        %1968 = vmatpush1.bf16.msra.mxu0 0
        %1969 = vmatprep.subr.bf16.mxu0 0
        %1970 = vmatpush1.bf16.msra.mxu0 0
        %1971 = vmatprep.subr.bf16.mxu0 0
        %1972 = vmatpush1.bf16.msra.mxu0 0
        %1973 = vmatprep.subr.bf16.mxu0 0
        %1974 = vmatpush1.bf16.msra.mxu0 0
        %1975 = vmatprep.subr.bf16.mxu0 0
        %1976 = vmatpush1.bf16.msra.mxu0 0
        %1977 = vmatprep.subr.bf16.mxu0 0
        %1978 = vmatpush1.bf16.msra.mxu0 0
        %1979 = vmatprep.subr.bf16.mxu0 0
        %1980 = vmatpush1.bf16.msra.mxu0 0
        %1981 = vmatprep.subr.bf16.mxu0 0
        %1982 = vmatpush1.bf16.msra.mxu0 0
        %1983 = vmatprep.subr.bf16.mxu0 0
        %1984 = vmatpush1.bf16.msra.mxu0 0
        %1985 = vmatprep.mubr.bf16.mxu0 0
        %1986 = vmatmul.mubr.bf16.gmra.mrb[0].mxu0 %v1951
        %v1987 = vpop.f32.mrb[0].mxu0
        %v1988 = vadd.f32 %v1923, %v1987
        %v1989 = vpop.f32.mrb[0].mxu0
        %v1990 = vpop.f32.mrb[0].mxu0
        %v1991 = vpop.f32.mrb[0].mxu0
        %1992 = vdwg.mxu0
        %v1993 = vadd.f32 %v1988, %v1840
        %v1994 = vsel %vm566, %v1993, 0.0
        %1995 = vadd.xlane.f32.xlu0 %v1994
        %v1996 = vpop.xlane.xlu0 %1995
        %v1997 = vmul.f32 %v1996, %v1154
        %v1998 = vsub.f32 %v1993, %v1997
        %v1999 = vmul.f32 %v1998, %v1998
        %v2000 = vsel %vm566, %v1999, 0.0
        %2001 = vadd.xlane.f32.xlu0 %v2000
        %v2002 = vpop.xlane.xlu0 %2001
        %v2003 = vmul.f32 %v2002, %v1154
        %v2004 = vadd.f32 %v2003, 1e-05
        %v2005 = vrsqrt.pop %v2004
        %v2006 = vmul.f32 %v1998, %v2005
        %v2007 = vmul.f32 %v2006, %v1170
        %v2008 = vadd.f32 %v2007, %v1178
        %2009 = vst.msk [vmem:[%s527] sm:$0xff] %vm566, %v2008
        %s2010 = sand.u32 %s384, 1
        %s2011 = scalar_lea.sflag [#allocation3], %s2010
        %s2012 = sand.u32 %s384, 1
        %s2013 = smul.addr %s2012, 8
        %s2014 = scalar_lea.vmem [#allocation2], %s2013
        // Predicated region
        $region85: #{decoder_forward.1} parent=83 // pred_check
          %p2015 = pneg %p394
        $region86: #{decoder_forward.1} parent=83 // pred_check_branch
          %2017 = sbr.rel (%p2015) target = $region88
        $region87: #{decoder_forward.1} parent=83 // pred_region
          %s2019 = ssub.s32 128, 128
          %2020 = vsyncadd %s2011, %s2019
          %s2021 = smul.addr %s30, 128
          %s2022 = scalar_lea.hbm %s16, %s2021
          %s2024 = sshll.u32 %s2014, 4
          %s2025 = int_to_ptr.vmem [resolvable:$true] %s2024
          %2027 = dma.vmem_to_hbm [thread:$0]  %s2025, 128, %s2022, %s2011
        $region88: #{decoder_forward.1} parent=83 // pred_fallthru
          _
      $region84: #{decoder_forward.1} parent=5 // pred_fallthru
        _
      %p2028 = scmp.le.s32.totalorder 2, %s25
      // Predicated region
      $region89: #{decoder_forward.1} parent=5 // pred_check
        %p2029 = pneg %p2028
      $region90: #{decoder_forward.1} parent=5 // pred_check_branch
        %2031 = sbr.rel (%p2029) target = $region92
      $region91: #{decoder_forward.1} parent=5 // pred_region
        %s2032 = ssub.s32 %s25, 2
        // Predicated region
        $region93: #{decoder_forward.1} parent=91 // pred_check
          %p2033 = pneg %p400
        $region94: #{decoder_forward.1} parent=91 // pred_check_branch
          %2035 = sbr.rel (%p2033) target = $region96
        $region95: #{decoder_forward.1} parent=91 // pred_region
          %s2036 = sand.u32 %s385, 1
          %s2037 = scalar_lea.sflag [#allocation3], %s2036
          %s2038 = sand.u32 %s385, 1
          %s2039 = smul.addr %s2038, 8
          %s2040 = scalar_lea.vmem [#allocation2], %s2039
          %2041 = dma.done %s2037, 128
        $region96: #{decoder_forward.1} parent=91 // pred_fallthru
          _
      $region92: #{decoder_forward.1} parent=5 // pred_fallthru
        _
    $region6: #{decoder_forward.1} parent=1 // loop_footer
      %s29 = sadd.s32 1, %s25
    $region7: #{decoder_forward.1} parent=1 // loop_footer_branch
      %24 = sbr.rel target = $region3
    $region8: #{decoder_forward.1} parent=1 // loop_exit
      _
    %2042 = vsyncpa [#allocation3], 1
    %s2043 = scalar_lea.sflag [#allocation3], 1
    %2044 = vsyncpa %s2043, 1

</llo_original>
